<compile_context>
chip_gen: v5e
topology: v5e:2x2
jax: 0.10.0
libtpu: 0.0.40
codegen_flags: <defaults>
</compile_context>

<pallas_src>
import jax
import jax.numpy as jnp
from jax.experimental import pallas as pl
from jax.experimental.pallas import tpu as pltpu


def lstm_rnn_kernel(gx0_ref, h0_ref, c0_ref,
                    w_ih_ref, w_hh_ref, b_ref,
                    w_out_ref, b_out_ref,
                    out_ref, ht_ref, hn_ref, cn_ref,
                    seq_ref, gx_ref):
    """Multi-layer LSTM (PyTorch semantics) + output Linear, fully in VMEM.

    gx0_ref:  (T, B, 4H)  layer-0 input-side gate pre-activations (bias already folded in)
    h0_ref:   (L, B, H)   initial hidden
    c0_ref:   (L, B, H)   initial cell
    w_ih_ref: (L, H, 4H)  input->gates weights, pre-transposed (layer 0 slot unused)
    w_hh_ref: (L, H, 4H)  hidden->gates weights, pre-transposed
    b_ref:    (L, 1, 4H)  b_ih + b_hh, pre-summed (layer 0 slot unused)
    w_out_ref:(H, O)      output projection weight, pre-transposed
    b_out_ref:(1, O)      output projection bias
    out_ref:  (B, T, O)   logits
    ht_ref:   (B, T, H)   top-layer hidden sequence
    hn_ref:   (L, B, H)   final hidden state
    cn_ref:   (L, B, H)   final cell state
    seq_ref:  (T, B, H)   VMEM scratch: inter-layer hidden sequence (time-major)
    gx_ref:   (T, B, 4H)  VMEM scratch: hoisted input-side gates for layers > 0
    """
    L, B, H = h0_ref.shape
    T = gx0_ref.shape[0]

    # Sequential over layers and time (small static trip counts -> fully unrolled).
    for l in range(L):
        is_top = (l == L - 1)

        # Input-side gate pre-activations for the WHOLE sequence, outside the recurrence.
        if l == 0:
            gx_src = gx0_ref                               # precomputed in the wrapper
        else:
            prev = seq_ref[...]                            # (T, B, H) previous layer output
            gx_ref[...] = jax.lax.dot_general(
                prev, w_ih_ref[l], (((2,), (0,)), ((), ())),
                preferred_element_type=jnp.float32) + b_ref[l]
            gx_src = gx_ref
        # TODO(synk): inter-layer dropout (p=0.2) is stochastic; treated as identity (eval).

        w_hh_l = w_hh_ref[l]                               # (H, 4H), hoisted out of t-loop
        h = h0_ref[l]
        c = c0_ref[l]
        for t in range(T):
            # Only the recurrence matmul stays on the serial path.
            gates = gx_src[t] + jax.lax.dot_general(
                h, w_hh_l, (((1,), (0,)), ((), ())),
                preferred_element_type=jnp.float32)        # (B, 4H)
            sig = jax.nn.sigmoid(gates)                    # one full 128-lane EUP pass
            i = sig[:, 0 * H:1 * H]
            f = sig[:, 1 * H:2 * H]
            o = sig[:, 3 * H:4 * H]
            g = jnp.tanh(gates[:, 2 * H:3 * H])            # narrow tanh only for g lanes
            c = f * c + i * g
            h = o * jnp.tanh(c)
            if is_top:
                ht_ref[:, t, :] = h
            else:
                seq_ref[t] = h
        hn_ref[l] = h
        cn_ref[l] = c

    # Output projection: (B, T, H) x (H, O) -> (B, T, O), one MXU slab at the end.
    ht_all = ht_ref[...]
    out_ref[...] = jax.lax.dot_general(
        ht_all, w_out_ref[...], (((2,), (0,)), ((), ())),
        preferred_element_type=jnp.float32) + b_out_ref[...]


def rnn_forward(tokens, hidden, params, *, n_k_factors, grammar_len):
    """Default (attn=False) forward path of the PyTorch RNN module."""
    h0, c0 = hidden
    L, B, H = h0.shape
    T = tokens.shape[1]
    O = params["w_out"].shape[0]

    # ---- Wrapper-side packing (tiny, constant-foldable under jit) ----
    w_ih_t = jnp.transpose(params["w_ih"], (0, 2, 1))      # (L, H, 4H)
    w_hh_t = jnp.transpose(params["w_hh"], (0, 2, 1))      # (L, H, 4H)
    b = params["b_ih"] + params["b_hh"]                    # (L, 1, 4H) pre-summed biases
    w_out_t = jnp.transpose(params["w_out"], (1, 0))       # (H, O)

    # Fuse embedding lookup + layer-0 x-matmul + layer-0 bias into a (vocab, 4H) table
    # gathered by token id (vocab < B*T).  Input dropout (p=0.2) is identity at inference.
    gate_tbl = params["embed"] @ jnp.transpose(params["w_ih"][0]) + b[0, 0]   # (vocab, 4H)
    gx0 = jnp.take(gate_tbl, tokens.T, axis=0)             # (T, B, 4H), time-major

    # Single grid step, everything resident in VMEM (~100 KiB << VMEM on v5e/v6e/v7x).
    # TODO(synk): if B grows in deployment, add a leading batch-parallel grid axis
    #             (dimension_semantics=("parallel",)) so both v7x TensorCores are used.
    vmem = pl.BlockSpec(memory_space=pltpu.MemorySpace.VMEM)
    out, ht, hn, cn = pl.pallas_call(
        lstm_rnn_kernel,
        out_shape=(
            jax.ShapeDtypeStruct((B, T, O), jnp.float32),
            jax.ShapeDtypeStruct((B, T, H), jnp.float32),
            jax.ShapeDtypeStruct((L, B, H), jnp.float32),
            jax.ShapeDtypeStruct((L, B, H), jnp.float32),
        ),
        in_specs=[vmem] * 8,
        out_specs=(vmem, vmem, vmem, vmem),
        scratch_shapes=[
            pltpu.VMEM((T, B, H), jnp.float32),        # inter-layer hidden sequence
            pltpu.VMEM((T, B, 4 * H), jnp.float32),    # hoisted input-side gates (layers > 0)
        ],
    )(gx0, h0, c0, w_ih_t, w_hh_t, b, w_out_t, params["b_out"])

    vis_attn = jnp.zeros((n_k_factors, B, 1, grammar_len), dtype=jnp.float32)
    return out, ht, (hn, cn), vis_attn


def ref_forward(tokens, hidden, params):
    """Pure-JAX reference with identical math (for correctness check)."""
    h0, c0 = hidden
    L, B, H = h0.shape
    T = tokens.shape[1]
    x = jnp.take(params["embed"], tokens, axis=0).astype(jnp.float32)
    hs, cs = [], []
    for l in range(L):
        h, c = h0[l], c0[l]
        outs = []
        for t in range(T):
            xt = x[:, t, :]
            gates = (xt @ params["w_ih"][l].T + h @ params["w_hh"][l].T
                     + params["b_ih"][l, 0] + params["b_hh"][l, 0])
            i = jax.nn.sigmoid(gates[:, :H])
            f = jax.nn.sigmoid(gates[:, H:2 * H])
            g = jnp.tanh(gates[:, 2 * H:3 * H])
            o = jax.nn.sigmoid(gates[:, 3 * H:])
            c = f * c + i * g
            h = o * jnp.tanh(c)
            outs.append(h)
        x = jnp.stack(outs, axis=1)
        hs.append(h)
        cs.append(c)
    out = x @ params["w_out"].T + params["b_out"][0]
    return out, x, (jnp.stack(hs), jnp.stack(cs))


if __name__ == "__main__":
    # Small shapes consistent with the module's forward.
    input_size = 12      # vocab
    hidden_size = 32
    output_size = 8
    n_layers = 2
    n_k_factors = 5
    grammar_len = 15
    B, T = 2, 8

    key = jax.random.PRNGKey(0)
    ks = jax.random.split(key, 8)
    s = 1.0 / jnp.sqrt(hidden_size)

    params = {
        "embed": jax.random.normal(ks[0], (input_size, hidden_size), jnp.float32) * 0.1,
        "w_ih": jax.random.uniform(ks[1], (n_layers, 4 * hidden_size, hidden_size),
                                   jnp.float32, -s, s),
        "w_hh": jax.random.uniform(ks[2], (n_layers, 4 * hidden_size, hidden_size),
                                   jnp.float32, -s, s),
        "b_ih": jax.random.uniform(ks[3], (n_layers, 1, 4 * hidden_size),
                                   jnp.float32, -s, s),
        "b_hh": jax.random.uniform(ks[4], (n_layers, 1, 4 * hidden_size),
                                   jnp.float32, -s, s),
        "w_out": jax.random.uniform(ks[5], (output_size, hidden_size),
                                    jnp.float32, -s, s),
        "b_out": jax.random.uniform(ks[6], (1, output_size), jnp.float32, -s, s),
    }

    tokens = jax.random.randint(ks[7], (B, T), 0, input_size, dtype=jnp.int32)
    h0 = jnp.zeros((n_layers, B, hidden_size), jnp.float32)
    c0 = jnp.zeros((n_layers, B, hidden_size), jnp.float32)

    out, ht, (hn, cn), vis_attn = rnn_forward(
        tokens, (h0, c0), params,
        n_k_factors=n_k_factors, grammar_len=grammar_len)
    jax.block_until_ready((out, ht, hn, cn, vis_attn))

    # Correctness check against a pure-JAX reference.
    r_out, r_ht, (r_hn, r_cn) = ref_forward(tokens, (h0, c0), params)
    assert jnp.allclose(out, r_out, atol=1e-5), "output mismatch"
    assert jnp.allclose(ht, r_ht, atol=1e-5), "ht mismatch"
    assert jnp.allclose(hn, r_hn, atol=1e-5), "hn mismatch"
    assert jnp.allclose(cn, r_cn, atol=1e-5), "cn mismatch"
    assert out.shape == (B, T, output_size)
    assert vis_attn.shape == (n_k_factors, B, 1, grammar_len)

    print("KERNEL_OK")
</pallas_src>

<mosaic_0001>
module attributes {stable_mosaic.version = 11 : i64} {
  func.func @lstm_rnn_kernel(%arg0: memref<8x2x128xf32, #tpu.memory_space<vmem>>, %arg1: memref<2x2x32xf32, #tpu.memory_space<vmem>>, %arg2: memref<2x2x32xf32, #tpu.memory_space<vmem>>, %arg3: memref<2x32x128xf32, #tpu.memory_space<vmem>>, %arg4: memref<2x32x128xf32, #tpu.memory_space<vmem>>, %arg5: memref<2x1x128xf32, #tpu.memory_space<vmem>>, %arg6: memref<32x8xf32, #tpu.memory_space<vmem>>, %arg7: memref<1x8xf32, #tpu.memory_space<vmem>>, %arg8: memref<2x8x8xf32, #tpu.memory_space<vmem>>, %arg9: memref<2x8x32xf32, #tpu.memory_space<vmem>>, %arg10: memref<2x2x32xf32, #tpu.memory_space<vmem>>, %arg11: memref<2x2x32xf32, #tpu.memory_space<vmem>>, %arg12: memref<8x2x32xf32, #tpu.memory_space<vmem>>, %arg13: memref<8x2x128xf32, #tpu.memory_space<vmem>>) attributes {dimension_semantics = [], scalar_prefetch = 0 : i64, scratch_operands = 2 : i64, tpu.core_type = #tpu.core_type<tc>} {
    %c0 = arith.constant 0 : index
    %c0_0 = arith.constant 0 : index
    %c0_1 = arith.constant 0 : index
    %0 = vector.load %arg4[%c0, %c0_0, %c0_1] : memref<2x32x128xf32, #tpu.memory_space<vmem>>, vector<1x32x128xf32>
    %1 = vector.shape_cast %0 : vector<1x32x128xf32> to vector<32x128xf32>
    %c0_2 = arith.constant 0 : index
    %c0_3 = arith.constant 0 : index
    %c0_4 = arith.constant 0 : index
    %2 = vector.load %arg1[%c0_2, %c0_3, %c0_4] : memref<2x2x32xf32, #tpu.memory_space<vmem>>, vector<1x2x32xf32>
    %3 = vector.shape_cast %2 : vector<1x2x32xf32> to vector<2x32xf32>
    %c0_5 = arith.constant 0 : index
    %c0_6 = arith.constant 0 : index
    %c0_7 = arith.constant 0 : index
    %4 = vector.load %arg2[%c0_5, %c0_6, %c0_7] : memref<2x2x32xf32, #tpu.memory_space<vmem>>, vector<1x2x32xf32>
    %5 = vector.shape_cast %4 : vector<1x2x32xf32> to vector<2x32xf32>
    %c0_8 = arith.constant 0 : index
    %c0_9 = arith.constant 0 : index
    %c0_10 = arith.constant 0 : index
    %6 = vector.load %arg0[%c0_8, %c0_9, %c0_10] : memref<8x2x128xf32, #tpu.memory_space<vmem>>, vector<1x2x128xf32>
    %7 = vector.shape_cast %6 : vector<1x2x128xf32> to vector<2x128xf32>
    %cst = arith.constant dense<0.000000e+00> : vector<2x128xf32>
    %8 = tpu.matmul %3, %1, %cst {dimension_numbers = #tpu.dot_dimension_numbers<[1], [0], [0], [1], [0, 0, 1, 1], [], []>} : vector<2x32xf32>, vector<32x128xf32>, vector<2x128xf32> -> vector<2x128xf32>
    %9 = arith.addf %7, %8 : vector<2x128xf32>
    %10 = arith.negf %9 : vector<2x128xf32>
    %11 = math.exp %10 : vector<2x128xf32>
    %cst_11 = arith.constant 1.000000e+00 : f32
    %12 = vector.broadcast %cst_11 : f32 to vector<2x128xf32>
    %13 = arith.addf %12, %11 : vector<2x128xf32>
    %14 = arith.divf %12, %13 : vector<2x128xf32>
    %15 = vector.extract_strided_slice %14 {offsets = [0, 0], sizes = [2, 32], strides = [1, 1]} : vector<2x128xf32> to vector<2x32xf32>
    %16 = vector.extract_strided_slice %14 {offsets = [0, 32], sizes = [2, 32], strides = [1, 1]} : vector<2x128xf32> to vector<2x32xf32>
    %17 = vector.extract_strided_slice %14 {offsets = [0, 96], sizes = [2, 32], strides = [1, 1]} : vector<2x128xf32> to vector<2x32xf32>
    %18 = vector.extract_strided_slice %9 {offsets = [0, 64], sizes = [2, 32], strides = [1, 1]} : vector<2x128xf32> to vector<2x32xf32>
    %19 = math.tanh %18 : vector<2x32xf32>
    %20 = arith.mulf %16, %5 : vector<2x32xf32>
    %21 = arith.mulf %15, %19 : vector<2x32xf32>
    %22 = arith.addf %20, %21 : vector<2x32xf32>
    %23 = math.tanh %22 : vector<2x32xf32>
    %24 = arith.mulf %17, %23 : vector<2x32xf32>
    %c0_12 = arith.constant 0 : index
    %c0_13 = arith.constant 0 : index
    %c0_14 = arith.constant 0 : index
    %25 = vector.load %arg12[%c0_12, %c0_13, %c0_14] : memref<8x2x32xf32, #tpu.memory_space<vmem>>, vector<1x2x32xf32>
    %26 = vector.shape_cast %25 : vector<1x2x32xf32> to vector<2x32xf32>
    %27 = vector.shape_cast %24 : vector<2x32xf32> to vector<1x2x32xf32>
    tpu.vector_store %arg12[%c0_12, %c0_13, %c0_14], %27 {strides = array<i32>} : memref<8x2x32xf32, #tpu.memory_space<vmem>>, vector<1x2x32xf32>,
    %c1 = arith.constant 1 : index
    %c0_15 = arith.constant 0 : index
    %c0_16 = arith.constant 0 : index
    %28 = vector.load %arg0[%c1, %c0_15, %c0_16] : memref<8x2x128xf32, #tpu.memory_space<vmem>>, vector<1x2x128xf32>
    %29 = vector.shape_cast %28 : vector<1x2x128xf32> to vector<2x128xf32>
    %cst_17 = arith.constant dense<0.000000e+00> : vector<2x128xf32>
    %30 = tpu.matmul %24, %1, %cst_17 {dimension_numbers = #tpu.dot_dimension_numbers<[1], [0], [0], [1], [0, 0, 1, 1], [], []>} : vector<2x32xf32>, vector<32x128xf32>, vector<2x128xf32> -> vector<2x128xf32>
    %31 = arith.addf %29, %30 : vector<2x128xf32>
    %32 = arith.negf %31 : vector<2x128xf32>
    %33 = math.exp %32 : vector<2x128xf32>
    %cst_18 = arith.constant 1.000000e+00 : f32
    %34 = vector.broadcast %cst_18 : f32 to vector<2x128xf32>
    %35 = arith.addf %34, %33 : vector<2x128xf32>
    %36 = arith.divf %34, %35 : vector<2x128xf32>
    %37 = vector.extract_strided_slice %36 {offsets = [0, 0], sizes = [2, 32], strides = [1, 1]} : vector<2x128xf32> to vector<2x32xf32>
    %38 = vector.extract_strided_slice %36 {offsets = [0, 32], sizes = [2, 32], strides = [1, 1]} : vector<2x128xf32> to vector<2x32xf32>
    %39 = vector.extract_strided_slice %36 {offsets = [0, 96], sizes = [2, 32], strides = [1, 1]} : vector<2x128xf32> to vector<2x32xf32>
    %40 = vector.extract_strided_slice %31 {offsets = [0, 64], sizes = [2, 32], strides = [1, 1]} : vector<2x128xf32> to vector<2x32xf32>
    %41 = math.tanh %40 : vector<2x32xf32>
    %42 = arith.mulf %38, %22 : vector<2x32xf32>
    %43 = arith.mulf %37, %41 : vector<2x32xf32>
    %44 = arith.addf %42, %43 : vector<2x32xf32>
    %45 = math.tanh %44 : vector<2x32xf32>
    %46 = arith.mulf %39, %45 : vector<2x32xf32>
    %c1_19 = arith.constant 1 : index
    %c0_20 = arith.constant 0 : index
    %c0_21 = arith.constant 0 : index
    %47 = vector.load %arg12[%c1_19, %c0_20, %c0_21] : memref<8x2x32xf32, #tpu.memory_space<vmem>>, vector<1x2x32xf32>
    %48 = vector.shape_cast %47 : vector<1x2x32xf32> to vector<2x32xf32>
    %49 = vector.shape_cast %46 : vector<2x32xf32> to vector<1x2x32xf32>
    tpu.vector_store %arg12[%c1_19, %c0_20, %c0_21], %49 {strides = array<i32>} : memref<8x2x32xf32, #tpu.memory_space<vmem>>, vector<1x2x32xf32>,
    %c2 = arith.constant 2 : index
    %c0_22 = arith.constant 0 : index
    %c0_23 = arith.constant 0 : index
    %50 = vector.load %arg0[%c2, %c0_22, %c0_23] : memref<8x2x128xf32, #tpu.memory_space<vmem>>, vector<1x2x128xf32>
    %51 = vector.shape_cast %50 : vector<1x2x128xf32> to vector<2x128xf32>
    %cst_24 = arith.constant dense<0.000000e+00> : vector<2x128xf32>
    %52 = tpu.matmul %46, %1, %cst_24 {dimension_numbers = #tpu.dot_dimension_numbers<[1], [0], [0], [1], [0, 0, 1, 1], [], []>} : vector<2x32xf32>, vector<32x128xf32>, vector<2x128xf32> -> vector<2x128xf32>
    %53 = arith.addf %51, %52 : vector<2x128xf32>
    %54 = arith.negf %53 : vector<2x128xf32>
    %55 = math.exp %54 : vector<2x128xf32>
    %cst_25 = arith.constant 1.000000e+00 : f32
    %56 = vector.broadcast %cst_25 : f32 to vector<2x128xf32>
    %57 = arith.addf %56, %55 : vector<2x128xf32>
    %58 = arith.divf %56, %57 : vector<2x128xf32>
    %59 = vector.extract_strided_slice %58 {offsets = [0, 0], sizes = [2, 32], strides = [1, 1]} : vector<2x128xf32> to vector<2x32xf32>
    %60 = vector.extract_strided_slice %58 {offsets = [0, 32], sizes = [2, 32], strides = [1, 1]} : vector<2x128xf32> to vector<2x32xf32>
    %61 = vector.extract_strided_slice %58 {offsets = [0, 96], sizes = [2, 32], strides = [1, 1]} : vector<2x128xf32> to vector<2x32xf32>
    %62 = vector.extract_strided_slice %53 {offsets = [0, 64], sizes = [2, 32], strides = [1, 1]} : vector<2x128xf32> to vector<2x32xf32>
    %63 = math.tanh %62 : vector<2x32xf32>
    %64 = arith.mulf %60, %44 : vector<2x32xf32>
    %65 = arith.mulf %59, %63 : vector<2x32xf32>
    %66 = arith.addf %64, %65 : vector<2x32xf32>
    %67 = math.tanh %66 : vector<2x32xf32>
    %68 = arith.mulf %61, %67 : vector<2x32xf32>
    %c2_26 = arith.constant 2 : index
    %c0_27 = arith.constant 0 : index
    %c0_28 = arith.constant 0 : index
    %69 = vector.load %arg12[%c2_26, %c0_27, %c0_28] : memref<8x2x32xf32, #tpu.memory_space<vmem>>, vector<1x2x32xf32>
    %70 = vector.shape_cast %69 : vector<1x2x32xf32> to vector<2x32xf32>
    %71 = vector.shape_cast %68 : vector<2x32xf32> to vector<1x2x32xf32>
    tpu.vector_store %arg12[%c2_26, %c0_27, %c0_28], %71 {strides = array<i32>} : memref<8x2x32xf32, #tpu.memory_space<vmem>>, vector<1x2x32xf32>,
    %c3 = arith.constant 3 : index
    %c0_29 = arith.constant 0 : index
    %c0_30 = arith.constant 0 : index
    %72 = vector.load %arg0[%c3, %c0_29, %c0_30] : memref<8x2x128xf32, #tpu.memory_space<vmem>>, vector<1x2x128xf32>
    %73 = vector.shape_cast %72 : vector<1x2x128xf32> to vector<2x128xf32>
    %cst_31 = arith.constant dense<0.000000e+00> : vector<2x128xf32>
    %74 = tpu.matmul %68, %1, %cst_31 {dimension_numbers = #tpu.dot_dimension_numbers<[1], [0], [0], [1], [0, 0, 1, 1], [], []>} : vector<2x32xf32>, vector<32x128xf32>, vector<2x128xf32> -> vector<2x128xf32>
    %75 = arith.addf %73, %74 : vector<2x128xf32>
    %76 = arith.negf %75 : vector<2x128xf32>
    %77 = math.exp %76 : vector<2x128xf32>
    %cst_32 = arith.constant 1.000000e+00 : f32
    %78 = vector.broadcast %cst_32 : f32 to vector<2x128xf32>
    %79 = arith.addf %78, %77 : vector<2x128xf32>
    %80 = arith.divf %78, %79 : vector<2x128xf32>
    %81 = vector.extract_strided_slice %80 {offsets = [0, 0], sizes = [2, 32], strides = [1, 1]} : vector<2x128xf32> to vector<2x32xf32>
    %82 = vector.extract_strided_slice %80 {offsets = [0, 32], sizes = [2, 32], strides = [1, 1]} : vector<2x128xf32> to vector<2x32xf32>
    %83 = vector.extract_strided_slice %80 {offsets = [0, 96], sizes = [2, 32], strides = [1, 1]} : vector<2x128xf32> to vector<2x32xf32>
    %84 = vector.extract_strided_slice %75 {offsets = [0, 64], sizes = [2, 32], strides = [1, 1]} : vector<2x128xf32> to vector<2x32xf32>
    %85 = math.tanh %84 : vector<2x32xf32>
    %86 = arith.mulf %82, %66 : vector<2x32xf32>
    %87 = arith.mulf %81, %85 : vector<2x32xf32>
    %88 = arith.addf %86, %87 : vector<2x32xf32>
    %89 = math.tanh %88 : vector<2x32xf32>
    %90 = arith.mulf %83, %89 : vector<2x32xf32>
    %c3_33 = arith.constant 3 : index
    %c0_34 = arith.constant 0 : index
    %c0_35 = arith.constant 0 : index
    %91 = vector.load %arg12[%c3_33, %c0_34, %c0_35] : memref<8x2x32xf32, #tpu.memory_space<vmem>>, vector<1x2x32xf32>
    %92 = vector.shape_cast %91 : vector<1x2x32xf32> to vector<2x32xf32>
    %93 = vector.shape_cast %90 : vector<2x32xf32> to vector<1x2x32xf32>
    tpu.vector_store %arg12[%c3_33, %c0_34, %c0_35], %93 {strides = array<i32>} : memref<8x2x32xf32, #tpu.memory_space<vmem>>, vector<1x2x32xf32>,
    %c4 = arith.constant 4 : index
    %c0_36 = arith.constant 0 : index
    %c0_37 = arith.constant 0 : index
    %94 = vector.load %arg0[%c4, %c0_36, %c0_37] : memref<8x2x128xf32, #tpu.memory_space<vmem>>, vector<1x2x128xf32>
    %95 = vector.shape_cast %94 : vector<1x2x128xf32> to vector<2x128xf32>
    %cst_38 = arith.constant dense<0.000000e+00> : vector<2x128xf32>
    %96 = tpu.matmul %90, %1, %cst_38 {dimension_numbers = #tpu.dot_dimension_numbers<[1], [0], [0], [1], [0, 0, 1, 1], [], []>} : vector<2x32xf32>, vector<32x128xf32>, vector<2x128xf32> -> vector<2x128xf32>
    %97 = arith.addf %95, %96 : vector<2x128xf32>
    %98 = arith.negf %97 : vector<2x128xf32>
    %99 = math.exp %98 : vector<2x128xf32>
    %cst_39 = arith.constant 1.000000e+00 : f32
    %100 = vector.broadcast %cst_39 : f32 to vector<2x128xf32>
    %101 = arith.addf %100, %99 : vector<2x128xf32>
    %102 = arith.divf %100, %101 : vector<2x128xf32>
    %103 = vector.extract_strided_slice %102 {offsets = [0, 0], sizes = [2, 32], strides = [1, 1]} : vector<2x128xf32> to vector<2x32xf32>
    %104 = vector.extract_strided_slice %102 {offsets = [0, 32], sizes = [2, 32], strides = [1, 1]} : vector<2x128xf32> to vector<2x32xf32>
    %105 = vector.extract_strided_slice %102 {offsets = [0, 96], sizes = [2, 32], strides = [1, 1]} : vector<2x128xf32> to vector<2x32xf32>
    %106 = vector.extract_strided_slice %97 {offsets = [0, 64], sizes = [2, 32], strides = [1, 1]} : vector<2x128xf32> to vector<2x32xf32>
    %107 = math.tanh %106 : vector<2x32xf32>
    %108 = arith.mulf %104, %88 : vector<2x32xf32>
    %109 = arith.mulf %103, %107 : vector<2x32xf32>
    %110 = arith.addf %108, %109 : vector<2x32xf32>
    %111 = math.tanh %110 : vector<2x32xf32>
    %112 = arith.mulf %105, %111 : vector<2x32xf32>
    %c4_40 = arith.constant 4 : index
    %c0_41 = arith.constant 0 : index
    %c0_42 = arith.constant 0 : index
    %113 = vector.load %arg12[%c4_40, %c0_41, %c0_42] : memref<8x2x32xf32, #tpu.memory_space<vmem>>, vector<1x2x32xf32>
    %114 = vector.shape_cast %113 : vector<1x2x32xf32> to vector<2x32xf32>
    %115 = vector.shape_cast %112 : vector<2x32xf32> to vector<1x2x32xf32>
    tpu.vector_store %arg12[%c4_40, %c0_41, %c0_42], %115 {strides = array<i32>} : memref<8x2x32xf32, #tpu.memory_space<vmem>>, vector<1x2x32xf32>,
    %c5 = arith.constant 5 : index
    %c0_43 = arith.constant 0 : index
    %c0_44 = arith.constant 0 : index
    %116 = vector.load %arg0[%c5, %c0_43, %c0_44] : memref<8x2x128xf32, #tpu.memory_space<vmem>>, vector<1x2x128xf32>
    %117 = vector.shape_cast %116 : vector<1x2x128xf32> to vector<2x128xf32>
    %cst_45 = arith.constant dense<0.000000e+00> : vector<2x128xf32>
    %118 = tpu.matmul %112, %1, %cst_45 {dimension_numbers = #tpu.dot_dimension_numbers<[1], [0], [0], [1], [0, 0, 1, 1], [], []>} : vector<2x32xf32>, vector<32x128xf32>, vector<2x128xf32> -> vector<2x128xf32>
    %119 = arith.addf %117, %118 : vector<2x128xf32>
    %120 = arith.negf %119 : vector<2x128xf32>
    %121 = math.exp %120 : vector<2x128xf32>
    %cst_46 = arith.constant 1.000000e+00 : f32
    %122 = vector.broadcast %cst_46 : f32 to vector<2x128xf32>
    %123 = arith.addf %122, %121 : vector<2x128xf32>
    %124 = arith.divf %122, %123 : vector<2x128xf32>
    %125 = vector.extract_strided_slice %124 {offsets = [0, 0], sizes = [2, 32], strides = [1, 1]} : vector<2x128xf32> to vector<2x32xf32>
    %126 = vector.extract_strided_slice %124 {offsets = [0, 32], sizes = [2, 32], strides = [1, 1]} : vector<2x128xf32> to vector<2x32xf32>
    %127 = vector.extract_strided_slice %124 {offsets = [0, 96], sizes = [2, 32], strides = [1, 1]} : vector<2x128xf32> to vector<2x32xf32>
    %128 = vector.extract_strided_slice %119 {offsets = [0, 64], sizes = [2, 32], strides = [1, 1]} : vector<2x128xf32> to vector<2x32xf32>
    %129 = math.tanh %128 : vector<2x32xf32>
    %130 = arith.mulf %126, %110 : vector<2x32xf32>
    %131 = arith.mulf %125, %129 : vector<2x32xf32>
    %132 = arith.addf %130, %131 : vector<2x32xf32>
    %133 = math.tanh %132 : vector<2x32xf32>
    %134 = arith.mulf %127, %133 : vector<2x32xf32>
    %c5_47 = arith.constant 5 : index
    %c0_48 = arith.constant 0 : index
    %c0_49 = arith.constant 0 : index
    %135 = vector.load %arg12[%c5_47, %c0_48, %c0_49] : memref<8x2x32xf32, #tpu.memory_space<vmem>>, vector<1x2x32xf32>
    %136 = vector.shape_cast %135 : vector<1x2x32xf32> to vector<2x32xf32>
    %137 = vector.shape_cast %134 : vector<2x32xf32> to vector<1x2x32xf32>
    tpu.vector_store %arg12[%c5_47, %c0_48, %c0_49], %137 {strides = array<i32>} : memref<8x2x32xf32, #tpu.memory_space<vmem>>, vector<1x2x32xf32>,
    %c6 = arith.constant 6 : index
    %c0_50 = arith.constant 0 : index
    %c0_51 = arith.constant 0 : index
    %138 = vector.load %arg0[%c6, %c0_50, %c0_51] : memref<8x2x128xf32, #tpu.memory_space<vmem>>, vector<1x2x128xf32>
    %139 = vector.shape_cast %138 : vector<1x2x128xf32> to vector<2x128xf32>
    %cst_52 = arith.constant dense<0.000000e+00> : vector<2x128xf32>
    %140 = tpu.matmul %134, %1, %cst_52 {dimension_numbers = #tpu.dot_dimension_numbers<[1], [0], [0], [1], [0, 0, 1, 1], [], []>} : vector<2x32xf32>, vector<32x128xf32>, vector<2x128xf32> -> vector<2x128xf32>
    %141 = arith.addf %139, %140 : vector<2x128xf32>
    %142 = arith.negf %141 : vector<2x128xf32>
    %143 = math.exp %142 : vector<2x128xf32>
    %cst_53 = arith.constant 1.000000e+00 : f32
    %144 = vector.broadcast %cst_53 : f32 to vector<2x128xf32>
    %145 = arith.addf %144, %143 : vector<2x128xf32>
    %146 = arith.divf %144, %145 : vector<2x128xf32>
    %147 = vector.extract_strided_slice %146 {offsets = [0, 0], sizes = [2, 32], strides = [1, 1]} : vector<2x128xf32> to vector<2x32xf32>
    %148 = vector.extract_strided_slice %146 {offsets = [0, 32], sizes = [2, 32], strides = [1, 1]} : vector<2x128xf32> to vector<2x32xf32>
    %149 = vector.extract_strided_slice %146 {offsets = [0, 96], sizes = [2, 32], strides = [1, 1]} : vector<2x128xf32> to vector<2x32xf32>
    %150 = vector.extract_strided_slice %141 {offsets = [0, 64], sizes = [2, 32], strides = [1, 1]} : vector<2x128xf32> to vector<2x32xf32>
    %151 = math.tanh %150 : vector<2x32xf32>
    %152 = arith.mulf %148, %132 : vector<2x32xf32>
    %153 = arith.mulf %147, %151 : vector<2x32xf32>
    %154 = arith.addf %152, %153 : vector<2x32xf32>
    %155 = math.tanh %154 : vector<2x32xf32>
    %156 = arith.mulf %149, %155 : vector<2x32xf32>
    %c6_54 = arith.constant 6 : index
    %c0_55 = arith.constant 0 : index
    %c0_56 = arith.constant 0 : index
    %157 = vector.load %arg12[%c6_54, %c0_55, %c0_56] : memref<8x2x32xf32, #tpu.memory_space<vmem>>, vector<1x2x32xf32>
    %158 = vector.shape_cast %157 : vector<1x2x32xf32> to vector<2x32xf32>
    %159 = vector.shape_cast %156 : vector<2x32xf32> to vector<1x2x32xf32>
    tpu.vector_store %arg12[%c6_54, %c0_55, %c0_56], %159 {strides = array<i32>} : memref<8x2x32xf32, #tpu.memory_space<vmem>>, vector<1x2x32xf32>,
    %c7 = arith.constant 7 : index
    %c0_57 = arith.constant 0 : index
    %c0_58 = arith.constant 0 : index
    %160 = vector.load %arg0[%c7, %c0_57, %c0_58] : memref<8x2x128xf32, #tpu.memory_space<vmem>>, vector<1x2x128xf32>
    %161 = vector.shape_cast %160 : vector<1x2x128xf32> to vector<2x128xf32>
    %cst_59 = arith.constant dense<0.000000e+00> : vector<2x128xf32>
    %162 = tpu.matmul %156, %1, %cst_59 {dimension_numbers = #tpu.dot_dimension_numbers<[1], [0], [0], [1], [0, 0, 1, 1], [], []>} : vector<2x32xf32>, vector<32x128xf32>, vector<2x128xf32> -> vector<2x128xf32>
    %163 = arith.addf %161, %162 : vector<2x128xf32>
    %164 = arith.negf %163 : vector<2x128xf32>
    %165 = math.exp %164 : vector<2x128xf32>
    %cst_60 = arith.constant 1.000000e+00 : f32
    %166 = vector.broadcast %cst_60 : f32 to vector<2x128xf32>
    %167 = arith.addf %166, %165 : vector<2x128xf32>
    %168 = arith.divf %166, %167 : vector<2x128xf32>
    %169 = vector.extract_strided_slice %168 {offsets = [0, 0], sizes = [2, 32], strides = [1, 1]} : vector<2x128xf32> to vector<2x32xf32>
    %170 = vector.extract_strided_slice %168 {offsets = [0, 32], sizes = [2, 32], strides = [1, 1]} : vector<2x128xf32> to vector<2x32xf32>
    %171 = vector.extract_strided_slice %168 {offsets = [0, 96], sizes = [2, 32], strides = [1, 1]} : vector<2x128xf32> to vector<2x32xf32>
    %172 = vector.extract_strided_slice %163 {offsets = [0, 64], sizes = [2, 32], strides = [1, 1]} : vector<2x128xf32> to vector<2x32xf32>
    %173 = math.tanh %172 : vector<2x32xf32>
    %174 = arith.mulf %170, %154 : vector<2x32xf32>
    %175 = arith.mulf %169, %173 : vector<2x32xf32>
    %176 = arith.addf %174, %175 : vector<2x32xf32>
    %177 = math.tanh %176 : vector<2x32xf32>
    %178 = arith.mulf %171, %177 : vector<2x32xf32>
    %c7_61 = arith.constant 7 : index
    %c0_62 = arith.constant 0 : index
    %c0_63 = arith.constant 0 : index
    %179 = vector.load %arg12[%c7_61, %c0_62, %c0_63] : memref<8x2x32xf32, #tpu.memory_space<vmem>>, vector<1x2x32xf32>
    %180 = vector.shape_cast %179 : vector<1x2x32xf32> to vector<2x32xf32>
    %181 = vector.shape_cast %178 : vector<2x32xf32> to vector<1x2x32xf32>
    tpu.vector_store %arg12[%c7_61, %c0_62, %c0_63], %181 {strides = array<i32>} : memref<8x2x32xf32, #tpu.memory_space<vmem>>, vector<1x2x32xf32>,
    %c0_64 = arith.constant 0 : index
    %c0_65 = arith.constant 0 : index
    %c0_66 = arith.constant 0 : index
    %182 = vector.load %arg10[%c0_64, %c0_65, %c0_66] : memref<2x2x32xf32, #tpu.memory_space<vmem>>, vector<1x2x32xf32>
    %183 = vector.shape_cast %182 : vector<1x2x32xf32> to vector<2x32xf32>
    %184 = vector.shape_cast %178 : vector<2x32xf32> to vector<1x2x32xf32>
    tpu.vector_store %arg10[%c0_64, %c0_65, %c0_66], %184 {strides = array<i32>} : memref<2x2x32xf32, #tpu.memory_space<vmem>>, vector<1x2x32xf32>,
    %c0_67 = arith.constant 0 : index
    %c0_68 = arith.constant 0 : index
    %c0_69 = arith.constant 0 : index
    %185 = vector.load %arg11[%c0_67, %c0_68, %c0_69] : memref<2x2x32xf32, #tpu.memory_space<vmem>>, vector<1x2x32xf32>
    %186 = vector.shape_cast %185 : vector<1x2x32xf32> to vector<2x32xf32>
    %187 = vector.shape_cast %176 : vector<2x32xf32> to vector<1x2x32xf32>
    tpu.vector_store %arg11[%c0_67, %c0_68, %c0_69], %187 {strides = array<i32>} : memref<2x2x32xf32, #tpu.memory_space<vmem>>, vector<1x2x32xf32>,
    %c0_70 = arith.constant 0 : index
    %c0_71 = arith.constant 0 : index
    %c0_72 = arith.constant 0 : index
    %188 = vector.load %arg12[%c0_70, %c0_71, %c0_72] : memref<8x2x32xf32, #tpu.memory_space<vmem>>, vector<8x2x32xf32>
    %c1_73 = arith.constant 1 : index
    %c0_74 = arith.constant 0 : index
    %c0_75 = arith.constant 0 : index
    %189 = vector.load %arg3[%c1_73, %c0_74, %c0_75] : memref<2x32x128xf32, #tpu.memory_space<vmem>>, vector<1x32x128xf32>
    %190 = vector.shape_cast %189 : vector<1x32x128xf32> to vector<32x128xf32>
    %cst_76 = arith.constant dense<0.000000e+00> : vector<8x2x128xf32>
    %191 = tpu.matmul %188, %190, %cst_76 {dimension_numbers = #tpu.dot_dimension_numbers<[2], [0], [0, 1], [1], [0, 0, 0, 1, 1, 1], [], []>} : vector<8x2x32xf32>, vector<32x128xf32>, vector<8x2x128xf32> -> vector<8x2x128xf32>
    %c1_77 = arith.constant 1 : index
    %c0_78 = arith.constant 0 : index
    %c0_79 = arith.constant 0 : index
    %192 = vector.load %arg5[%c1_77, %c0_78, %c0_79] : memref<2x1x128xf32, #tpu.memory_space<vmem>>, vector<1x1x128xf32>
    %193 = vector.shape_cast %192 : vector<1x1x128xf32> to vector<1x128xf32>
    %194 = vector.shape_cast %193 : vector<1x128xf32> to vector<1x1x128xf32>
    %195 = vector.broadcast %194 : vector<1x1x128xf32> to vector<8x2x128xf32>
    %196 = arith.addf %191, %195 : vector<8x2x128xf32>
    %c0_80 = arith.constant 0 : index
    %c0_81 = arith.constant 0 : index
    %c0_82 = arith.constant 0 : index
    %197 = vector.load %arg13[%c0_80, %c0_81, %c0_82] : memref<8x2x128xf32, #tpu.memory_space<vmem>>, vector<8x2x128xf32>
    tpu.vector_store %arg13[%c0_80, %c0_81, %c0_82], %196 {strides = array<i32>} : memref<8x2x128xf32, #tpu.memory_space<vmem>>, vector<8x2x128xf32>,
    %c1_83 = arith.constant 1 : index
    %c0_84 = arith.constant 0 : index
    %c0_85 = arith.constant 0 : index
    %198 = vector.load %arg4[%c1_83, %c0_84, %c0_85] : memref<2x32x128xf32, #tpu.memory_space<vmem>>, vector<1x32x128xf32>
    %199 = vector.shape_cast %198 : vector<1x32x128xf32> to vector<32x128xf32>
    %c1_86 = arith.constant 1 : index
    %c0_87 = arith.constant 0 : index
    %c0_88 = arith.constant 0 : index
    %200 = vector.load %arg1[%c1_86, %c0_87, %c0_88] : memref<2x2x32xf32, #tpu.memory_space<vmem>>, vector<1x2x32xf32>
    %201 = vector.shape_cast %200 : vector<1x2x32xf32> to vector<2x32xf32>
    %c1_89 = arith.constant 1 : index
    %c0_90 = arith.constant 0 : index
    %c0_91 = arith.constant 0 : index
    %202 = vector.load %arg2[%c1_89, %c0_90, %c0_91] : memref<2x2x32xf32, #tpu.memory_space<vmem>>, vector<1x2x32xf32>
    %203 = vector.shape_cast %202 : vector<1x2x32xf32> to vector<2x32xf32>
    %c0_92 = arith.constant 0 : index
    %c0_93 = arith.constant 0 : index
    %c0_94 = arith.constant 0 : index
    %204 = vector.load %arg13[%c0_92, %c0_93, %c0_94] : memref<8x2x128xf32, #tpu.memory_space<vmem>>, vector<1x2x128xf32>
    %205 = vector.shape_cast %204 : vector<1x2x128xf32> to vector<2x128xf32>
    %cst_95 = arith.constant dense<0.000000e+00> : vector<2x128xf32>
    %206 = tpu.matmul %201, %199, %cst_95 {dimension_numbers = #tpu.dot_dimension_numbers<[1], [0], [0], [1], [0, 0, 1, 1], [], []>} : vector<2x32xf32>, vector<32x128xf32>, vector<2x128xf32> -> vector<2x128xf32>
    %207 = arith.addf %205, %206 : vector<2x128xf32>
    %208 = arith.negf %207 : vector<2x128xf32>
    %209 = math.exp %208 : vector<2x128xf32>
    %cst_96 = arith.constant 1.000000e+00 : f32
    %210 = vector.broadcast %cst_96 : f32 to vector<2x128xf32>
    %211 = arith.addf %210, %209 : vector<2x128xf32>
    %212 = arith.divf %210, %211 : vector<2x128xf32>
    %213 = vector.extract_strided_slice %212 {offsets = [0, 0], sizes = [2, 32], strides = [1, 1]} : vector<2x128xf32> to vector<2x32xf32>
    %214 = vector.extract_strided_slice %212 {offsets = [0, 32], sizes = [2, 32], strides = [1, 1]} : vector<2x128xf32> to vector<2x32xf32>
    %215 = vector.extract_strided_slice %212 {offsets = [0, 96], sizes = [2, 32], strides = [1, 1]} : vector<2x128xf32> to vector<2x32xf32>
    %216 = vector.extract_strided_slice %207 {offsets = [0, 64], sizes = [2, 32], strides = [1, 1]} : vector<2x128xf32> to vector<2x32xf32>
    %217 = math.tanh %216 : vector<2x32xf32>
    %218 = arith.mulf %214, %203 : vector<2x32xf32>
    %219 = arith.mulf %213, %217 : vector<2x32xf32>
    %220 = arith.addf %218, %219 : vector<2x32xf32>
    %221 = math.tanh %220 : vector<2x32xf32>
    %222 = arith.mulf %215, %221 : vector<2x32xf32>
    %c0_97 = arith.constant 0 : index
    %c0_98 = arith.constant 0 : index
    %c0_99 = arith.constant 0 : index
    %223 = vector.load %arg9[%c0_97, %c0_98, %c0_99] : memref<2x8x32xf32, #tpu.memory_space<vmem>>, vector<2x1x32xf32>
    %224 = vector.shape_cast %223 : vector<2x1x32xf32> to vector<2x32xf32>
    %225 = vector.shape_cast %222 : vector<2x32xf32> to vector<2x1x32xf32>
    tpu.vector_store %arg9[%c0_97, %c0_98, %c0_99], %225 {strides = array<i32>} : memref<2x8x32xf32, #tpu.memory_space<vmem>>, vector<2x1x32xf32>,
    %c1_100 = arith.constant 1 : index
    %c0_101 = arith.constant 0 : index
    %c0_102 = arith.constant 0 : index
    %226 = vector.load %arg13[%c1_100, %c0_101, %c0_102] : memref<8x2x128xf32, #tpu.memory_space<vmem>>, vector<1x2x128xf32>
    %227 = vector.shape_cast %226 : vector<1x2x128xf32> to vector<2x128xf32>
    %cst_103 = arith.constant dense<0.000000e+00> : vector<2x128xf32>
    %228 = tpu.matmul %222, %199, %cst_103 {dimension_numbers = #tpu.dot_dimension_numbers<[1], [0], [0], [1], [0, 0, 1, 1], [], []>} : vector<2x32xf32>, vector<32x128xf32>, vector<2x128xf32> -> vector<2x128xf32>
    %229 = arith.addf %227, %228 : vector<2x128xf32>
    %230 = arith.negf %229 : vector<2x128xf32>
    %231 = math.exp %230 : vector<2x128xf32>
    %cst_104 = arith.constant 1.000000e+00 : f32
    %232 = vector.broadcast %cst_104 : f32 to vector<2x128xf32>
    %233 = arith.addf %232, %231 : vector<2x128xf32>
    %234 = arith.divf %232, %233 : vector<2x128xf32>
    %235 = vector.extract_strided_slice %234 {offsets = [0, 0], sizes = [2, 32], strides = [1, 1]} : vector<2x128xf32> to vector<2x32xf32>
    %236 = vector.extract_strided_slice %234 {offsets = [0, 32], sizes = [2, 32], strides = [1, 1]} : vector<2x128xf32> to vector<2x32xf32>
    %237 = vector.extract_strided_slice %234 {offsets = [0, 96], sizes = [2, 32], strides = [1, 1]} : vector<2x128xf32> to vector<2x32xf32>
    %238 = vector.extract_strided_slice %229 {offsets = [0, 64], sizes = [2, 32], strides = [1, 1]} : vector<2x128xf32> to vector<2x32xf32>
    %239 = math.tanh %238 : vector<2x32xf32>
    %240 = arith.mulf %236, %220 : vector<2x32xf32>
    %241 = arith.mulf %235, %239 : vector<2x32xf32>
    %242 = arith.addf %240, %241 : vector<2x32xf32>
    %243 = math.tanh %242 : vector<2x32xf32>
    %244 = arith.mulf %237, %243 : vector<2x32xf32>
    %c0_105 = arith.constant 0 : index
    %c1_106 = arith.constant 1 : index
    %c0_107 = arith.constant 0 : index
    %245 = vector.load %arg9[%c0_105, %c1_106, %c0_107] : memref<2x8x32xf32, #tpu.memory_space<vmem>>, vector<2x1x32xf32>
    %246 = vector.shape_cast %245 : vector<2x1x32xf32> to vector<2x32xf32>
    %247 = vector.shape_cast %244 : vector<2x32xf32> to vector<2x1x32xf32>
    tpu.vector_store %arg9[%c0_105, %c1_106, %c0_107], %247 {strides = array<i32>} : memref<2x8x32xf32, #tpu.memory_space<vmem>>, vector<2x1x32xf32>,
    %c2_108 = arith.constant 2 : index
    %c0_109 = arith.constant 0 : index
    %c0_110 = arith.constant 0 : index
    %248 = vector.load %arg13[%c2_108, %c0_109, %c0_110] : memref<8x2x128xf32, #tpu.memory_space<vmem>>, vector<1x2x128xf32>
    %249 = vector.shape_cast %248 : vector<1x2x128xf32> to vector<2x128xf32>
    %cst_111 = arith.constant dense<0.000000e+00> : vector<2x128xf32>
    %250 = tpu.matmul %244, %199, %cst_111 {dimension_numbers = #tpu.dot_dimension_numbers<[1], [0], [0], [1], [0, 0, 1, 1], [], []>} : vector<2x32xf32>, vector<32x128xf32>, vector<2x128xf32> -> vector<2x128xf32>
    %251 = arith.addf %249, %250 : vector<2x128xf32>
    %252 = arith.negf %251 : vector<2x128xf32>
    %253 = math.exp %252 : vector<2x128xf32>
    %cst_112 = arith.constant 1.000000e+00 : f32
    %254 = vector.broadcast %cst_112 : f32 to vector<2x128xf32>
    %255 = arith.addf %254, %253 : vector<2x128xf32>
    %256 = arith.divf %254, %255 : vector<2x128xf32>
    %257 = vector.extract_strided_slice %256 {offsets = [0, 0], sizes = [2, 32], strides = [1, 1]} : vector<2x128xf32> to vector<2x32xf32>
    %258 = vector.extract_strided_slice %256 {offsets = [0, 32], sizes = [2, 32], strides = [1, 1]} : vector<2x128xf32> to vector<2x32xf32>
    %259 = vector.extract_strided_slice %256 {offsets = [0, 96], sizes = [2, 32], strides = [1, 1]} : vector<2x128xf32> to vector<2x32xf32>
    %260 = vector.extract_strided_slice %251 {offsets = [0, 64], sizes = [2, 32], strides = [1, 1]} : vector<2x128xf32> to vector<2x32xf32>
    %261 = math.tanh %260 : vector<2x32xf32>
    %262 = arith.mulf %258, %242 : vector<2x32xf32>
    %263 = arith.mulf %257, %261 : vector<2x32xf32>
    %264 = arith.addf %262, %263 : vector<2x32xf32>
    %265 = math.tanh %264 : vector<2x32xf32>
    %266 = arith.mulf %259, %265 : vector<2x32xf32>
    %c0_113 = arith.constant 0 : index
    %c2_114 = arith.constant 2 : index
    %c0_115 = arith.constant 0 : index
    %267 = vector.load %arg9[%c0_113, %c2_114, %c0_115] : memref<2x8x32xf32, #tpu.memory_space<vmem>>, vector<2x1x32xf32>
    %268 = vector.shape_cast %267 : vector<2x1x32xf32> to vector<2x32xf32>
    %269 = vector.shape_cast %266 : vector<2x32xf32> to vector<2x1x32xf32>
    tpu.vector_store %arg9[%c0_113, %c2_114, %c0_115], %269 {strides = array<i32>} : memref<2x8x32xf32, #tpu.memory_space<vmem>>, vector<2x1x32xf32>,
    %c3_116 = arith.constant 3 : index
    %c0_117 = arith.constant 0 : index
    %c0_118 = arith.constant 0 : index
    %270 = vector.load %arg13[%c3_116, %c0_117, %c0_118] : memref<8x2x128xf32, #tpu.memory_space<vmem>>, vector<1x2x128xf32>
    %271 = vector.shape_cast %270 : vector<1x2x128xf32> to vector<2x128xf32>
    %cst_119 = arith.constant dense<0.000000e+00> : vector<2x128xf32>
    %272 = tpu.matmul %266, %199, %cst_119 {dimension_numbers = #tpu.dot_dimension_numbers<[1], [0], [0], [1], [0, 0, 1, 1], [], []>} : vector<2x32xf32>, vector<32x128xf32>, vector<2x128xf32> -> vector<2x128xf32>
    %273 = arith.addf %271, %272 : vector<2x128xf32>
    %274 = arith.negf %273 : vector<2x128xf32>
    %275 = math.exp %274 : vector<2x128xf32>
    %cst_120 = arith.constant 1.000000e+00 : f32
    %276 = vector.broadcast %cst_120 : f32 to vector<2x128xf32>
    %277 = arith.addf %276, %275 : vector<2x128xf32>
    %278 = arith.divf %276, %277 : vector<2x128xf32>
    %279 = vector.extract_strided_slice %278 {offsets = [0, 0], sizes = [2, 32], strides = [1, 1]} : vector<2x128xf32> to vector<2x32xf32>
    %280 = vector.extract_strided_slice %278 {offsets = [0, 32], sizes = [2, 32], strides = [1, 1]} : vector<2x128xf32> to vector<2x32xf32>
    %281 = vector.extract_strided_slice %278 {offsets = [0, 96], sizes = [2, 32], strides = [1, 1]} : vector<2x128xf32> to vector<2x32xf32>
    %282 = vector.extract_strided_slice %273 {offsets = [0, 64], sizes = [2, 32], strides = [1, 1]} : vector<2x128xf32> to vector<2x32xf32>
    %283 = math.tanh %282 : vector<2x32xf32>
    %284 = arith.mulf %280, %264 : vector<2x32xf32>
    %285 = arith.mulf %279, %283 : vector<2x32xf32>
    %286 = arith.addf %284, %285 : vector<2x32xf32>
    %287 = math.tanh %286 : vector<2x32xf32>
    %288 = arith.mulf %281, %287 : vector<2x32xf32>
    %c0_121 = arith.constant 0 : index
    %c3_122 = arith.constant 3 : index
    %c0_123 = arith.constant 0 : index
    %289 = vector.load %arg9[%c0_121, %c3_122, %c0_123] : memref<2x8x32xf32, #tpu.memory_space<vmem>>, vector<2x1x32xf32>
    %290 = vector.shape_cast %289 : vector<2x1x32xf32> to vector<2x32xf32>
    %291 = vector.shape_cast %288 : vector<2x32xf32> to vector<2x1x32xf32>
    tpu.vector_store %arg9[%c0_121, %c3_122, %c0_123], %291 {strides = array<i32>} : memref<2x8x32xf32, #tpu.memory_space<vmem>>, vector<2x1x32xf32>,
    %c4_124 = arith.constant 4 : index
    %c0_125 = arith.constant 0 : index
    %c0_126 = arith.constant 0 : index
    %292 = vector.load %arg13[%c4_124, %c0_125, %c0_126] : memref<8x2x128xf32, #tpu.memory_space<vmem>>, vector<1x2x128xf32>
    %293 = vector.shape_cast %292 : vector<1x2x128xf32> to vector<2x128xf32>
    %cst_127 = arith.constant dense<0.000000e+00> : vector<2x128xf32>
    %294 = tpu.matmul %288, %199, %cst_127 {dimension_numbers = #tpu.dot_dimension_numbers<[1], [0], [0], [1], [0, 0, 1, 1], [], []>} : vector<2x32xf32>, vector<32x128xf32>, vector<2x128xf32> -> vector<2x128xf32>
    %295 = arith.addf %293, %294 : vector<2x128xf32>
    %296 = arith.negf %295 : vector<2x128xf32>
    %297 = math.exp %296 : vector<2x128xf32>
    %cst_128 = arith.constant 1.000000e+00 : f32
    %298 = vector.broadcast %cst_128 : f32 to vector<2x128xf32>
    %299 = arith.addf %298, %297 : vector<2x128xf32>
    %300 = arith.divf %298, %299 : vector<2x128xf32>
    %301 = vector.extract_strided_slice %300 {offsets = [0, 0], sizes = [2, 32], strides = [1, 1]} : vector<2x128xf32> to vector<2x32xf32>
    %302 = vector.extract_strided_slice %300 {offsets = [0, 32], sizes = [2, 32], strides = [1, 1]} : vector<2x128xf32> to vector<2x32xf32>
    %303 = vector.extract_strided_slice %300 {offsets = [0, 96], sizes = [2, 32], strides = [1, 1]} : vector<2x128xf32> to vector<2x32xf32>
    %304 = vector.extract_strided_slice %295 {offsets = [0, 64], sizes = [2, 32], strides = [1, 1]} : vector<2x128xf32> to vector<2x32xf32>
    %305 = math.tanh %304 : vector<2x32xf32>
    %306 = arith.mulf %302, %286 : vector<2x32xf32>
    %307 = arith.mulf %301, %305 : vector<2x32xf32>
    %308 = arith.addf %306, %307 : vector<2x32xf32>
    %309 = math.tanh %308 : vector<2x32xf32>
    %310 = arith.mulf %303, %309 : vector<2x32xf32>
    %c0_129 = arith.constant 0 : index
    %c4_130 = arith.constant 4 : index
    %c0_131 = arith.constant 0 : index
    %311 = vector.load %arg9[%c0_129, %c4_130, %c0_131] : memref<2x8x32xf32, #tpu.memory_space<vmem>>, vector<2x1x32xf32>
    %312 = vector.shape_cast %311 : vector<2x1x32xf32> to vector<2x32xf32>
    %313 = vector.shape_cast %310 : vector<2x32xf32> to vector<2x1x32xf32>
    tpu.vector_store %arg9[%c0_129, %c4_130, %c0_131], %313 {strides = array<i32>} : memref<2x8x32xf32, #tpu.memory_space<vmem>>, vector<2x1x32xf32>,
    %c5_132 = arith.constant 5 : index
    %c0_133 = arith.constant 0 : index
    %c0_134 = arith.constant 0 : index
    %314 = vector.load %arg13[%c5_132, %c0_133, %c0_134] : memref<8x2x128xf32, #tpu.memory_space<vmem>>, vector<1x2x128xf32>
    %315 = vector.shape_cast %314 : vector<1x2x128xf32> to vector<2x128xf32>
    %cst_135 = arith.constant dense<0.000000e+00> : vector<2x128xf32>
    %316 = tpu.matmul %310, %199, %cst_135 {dimension_numbers = #tpu.dot_dimension_numbers<[1], [0], [0], [1], [0, 0, 1, 1], [], []>} : vector<2x32xf32>, vector<32x128xf32>, vector<2x128xf32> -> vector<2x128xf32>
    %317 = arith.addf %315, %316 : vector<2x128xf32>
    %318 = arith.negf %317 : vector<2x128xf32>
    %319 = math.exp %318 : vector<2x128xf32>
    %cst_136 = arith.constant 1.000000e+00 : f32
    %320 = vector.broadcast %cst_136 : f32 to vector<2x128xf32>
    %321 = arith.addf %320, %319 : vector<2x128xf32>
    %322 = arith.divf %320, %321 : vector<2x128xf32>
    %323 = vector.extract_strided_slice %322 {offsets = [0, 0], sizes = [2, 32], strides = [1, 1]} : vector<2x128xf32> to vector<2x32xf32>
    %324 = vector.extract_strided_slice %322 {offsets = [0, 32], sizes = [2, 32], strides = [1, 1]} : vector<2x128xf32> to vector<2x32xf32>
    %325 = vector.extract_strided_slice %322 {offsets = [0, 96], sizes = [2, 32], strides = [1, 1]} : vector<2x128xf32> to vector<2x32xf32>
    %326 = vector.extract_strided_slice %317 {offsets = [0, 64], sizes = [2, 32], strides = [1, 1]} : vector<2x128xf32> to vector<2x32xf32>
    %327 = math.tanh %326 : vector<2x32xf32>
    %328 = arith.mulf %324, %308 : vector<2x32xf32>
    %329 = arith.mulf %323, %327 : vector<2x32xf32>
    %330 = arith.addf %328, %329 : vector<2x32xf32>
    %331 = math.tanh %330 : vector<2x32xf32>
    %332 = arith.mulf %325, %331 : vector<2x32xf32>
    %c0_137 = arith.constant 0 : index
    %c5_138 = arith.constant 5 : index
    %c0_139 = arith.constant 0 : index
    %333 = vector.load %arg9[%c0_137, %c5_138, %c0_139] : memref<2x8x32xf32, #tpu.memory_space<vmem>>, vector<2x1x32xf32>
    %334 = vector.shape_cast %333 : vector<2x1x32xf32> to vector<2x32xf32>
    %335 = vector.shape_cast %332 : vector<2x32xf32> to vector<2x1x32xf32>
    tpu.vector_store %arg9[%c0_137, %c5_138, %c0_139], %335 {strides = array<i32>} : memref<2x8x32xf32, #tpu.memory_space<vmem>>, vector<2x1x32xf32>,
    %c6_140 = arith.constant 6 : index
    %c0_141 = arith.constant 0 : index
    %c0_142 = arith.constant 0 : index
    %336 = vector.load %arg13[%c6_140, %c0_141, %c0_142] : memref<8x2x128xf32, #tpu.memory_space<vmem>>, vector<1x2x128xf32>
    %337 = vector.shape_cast %336 : vector<1x2x128xf32> to vector<2x128xf32>
    %cst_143 = arith.constant dense<0.000000e+00> : vector<2x128xf32>
    %338 = tpu.matmul %332, %199, %cst_143 {dimension_numbers = #tpu.dot_dimension_numbers<[1], [0], [0], [1], [0, 0, 1, 1], [], []>} : vector<2x32xf32>, vector<32x128xf32>, vector<2x128xf32> -> vector<2x128xf32>
    %339 = arith.addf %337, %338 : vector<2x128xf32>
    %340 = arith.negf %339 : vector<2x128xf32>
    %341 = math.exp %340 : vector<2x128xf32>
    %cst_144 = arith.constant 1.000000e+00 : f32
    %342 = vector.broadcast %cst_144 : f32 to vector<2x128xf32>
    %343 = arith.addf %342, %341 : vector<2x128xf32>
    %344 = arith.divf %342, %343 : vector<2x128xf32>
    %345 = vector.extract_strided_slice %344 {offsets = [0, 0], sizes = [2, 32], strides = [1, 1]} : vector<2x128xf32> to vector<2x32xf32>
    %346 = vector.extract_strided_slice %344 {offsets = [0, 32], sizes = [2, 32], strides = [1, 1]} : vector<2x128xf32> to vector<2x32xf32>
    %347 = vector.extract_strided_slice %344 {offsets = [0, 96], sizes = [2, 32], strides = [1, 1]} : vector<2x128xf32> to vector<2x32xf32>
    %348 = vector.extract_strided_slice %339 {offsets = [0, 64], sizes = [2, 32], strides = [1, 1]} : vector<2x128xf32> to vector<2x32xf32>
    %349 = math.tanh %348 : vector<2x32xf32>
    %350 = arith.mulf %346, %330 : vector<2x32xf32>
    %351 = arith.mulf %345, %349 : vector<2x32xf32>
    %352 = arith.addf %350, %351 : vector<2x32xf32>
    %353 = math.tanh %352 : vector<2x32xf32>
    %354 = arith.mulf %347, %353 : vector<2x32xf32>
    %c0_145 = arith.constant 0 : index
    %c6_146 = arith.constant 6 : index
    %c0_147 = arith.constant 0 : index
    %355 = vector.load %arg9[%c0_145, %c6_146, %c0_147] : memref<2x8x32xf32, #tpu.memory_space<vmem>>, vector<2x1x32xf32>
    %356 = vector.shape_cast %355 : vector<2x1x32xf32> to vector<2x32xf32>
    %357 = vector.shape_cast %354 : vector<2x32xf32> to vector<2x1x32xf32>
    tpu.vector_store %arg9[%c0_145, %c6_146, %c0_147], %357 {strides = array<i32>} : memref<2x8x32xf32, #tpu.memory_space<vmem>>, vector<2x1x32xf32>,
    %c7_148 = arith.constant 7 : index
    %c0_149 = arith.constant 0 : index
    %c0_150 = arith.constant 0 : index
    %358 = vector.load %arg13[%c7_148, %c0_149, %c0_150] : memref<8x2x128xf32, #tpu.memory_space<vmem>>, vector<1x2x128xf32>
    %359 = vector.shape_cast %358 : vector<1x2x128xf32> to vector<2x128xf32>
    %cst_151 = arith.constant dense<0.000000e+00> : vector<2x128xf32>
    %360 = tpu.matmul %354, %199, %cst_151 {dimension_numbers = #tpu.dot_dimension_numbers<[1], [0], [0], [1], [0, 0, 1, 1], [], []>} : vector<2x32xf32>, vector<32x128xf32>, vector<2x128xf32> -> vector<2x128xf32>
    %361 = arith.addf %359, %360 : vector<2x128xf32>
    %362 = arith.negf %361 : vector<2x128xf32>
    %363 = math.exp %362 : vector<2x128xf32>
    %cst_152 = arith.constant 1.000000e+00 : f32
    %364 = vector.broadcast %cst_152 : f32 to vector<2x128xf32>
    %365 = arith.addf %364, %363 : vector<2x128xf32>
    %366 = arith.divf %364, %365 : vector<2x128xf32>
    %367 = vector.extract_strided_slice %366 {offsets = [0, 0], sizes = [2, 32], strides = [1, 1]} : vector<2x128xf32> to vector<2x32xf32>
    %368 = vector.extract_strided_slice %366 {offsets = [0, 32], sizes = [2, 32], strides = [1, 1]} : vector<2x128xf32> to vector<2x32xf32>
    %369 = vector.extract_strided_slice %366 {offsets = [0, 96], sizes = [2, 32], strides = [1, 1]} : vector<2x128xf32> to vector<2x32xf32>
    %370 = vector.extract_strided_slice %361 {offsets = [0, 64], sizes = [2, 32], strides = [1, 1]} : vector<2x128xf32> to vector<2x32xf32>
    %371 = math.tanh %370 : vector<2x32xf32>
    %372 = arith.mulf %368, %352 : vector<2x32xf32>
    %373 = arith.mulf %367, %371 : vector<2x32xf32>
    %374 = arith.addf %372, %373 : vector<2x32xf32>
    %375 = math.tanh %374 : vector<2x32xf32>
    %376 = arith.mulf %369, %375 : vector<2x32xf32>
    %c0_153 = arith.constant 0 : index
    %c7_154 = arith.constant 7 : index
    %c0_155 = arith.constant 0 : index
    %377 = vector.load %arg9[%c0_153, %c7_154, %c0_155] : memref<2x8x32xf32, #tpu.memory_space<vmem>>, vector<2x1x32xf32>
    %378 = vector.shape_cast %377 : vector<2x1x32xf32> to vector<2x32xf32>
    %379 = vector.shape_cast %376 : vector<2x32xf32> to vector<2x1x32xf32>
    tpu.vector_store %arg9[%c0_153, %c7_154, %c0_155], %379 {strides = array<i32>} : memref<2x8x32xf32, #tpu.memory_space<vmem>>, vector<2x1x32xf32>,
    %c1_156 = arith.constant 1 : index
    %c0_157 = arith.constant 0 : index
    %c0_158 = arith.constant 0 : index
    %380 = vector.load %arg10[%c1_156, %c0_157, %c0_158] : memref<2x2x32xf32, #tpu.memory_space<vmem>>, vector<1x2x32xf32>
    %381 = vector.shape_cast %380 : vector<1x2x32xf32> to vector<2x32xf32>
    %382 = vector.shape_cast %376 : vector<2x32xf32> to vector<1x2x32xf32>
    tpu.vector_store %arg10[%c1_156, %c0_157, %c0_158], %382 {strides = array<i32>} : memref<2x2x32xf32, #tpu.memory_space<vmem>>, vector<1x2x32xf32>,
    %c1_159 = arith.constant 1 : index
    %c0_160 = arith.constant 0 : index
    %c0_161 = arith.constant 0 : index
    %383 = vector.load %arg11[%c1_159, %c0_160, %c0_161] : memref<2x2x32xf32, #tpu.memory_space<vmem>>, vector<1x2x32xf32>
    %384 = vector.shape_cast %383 : vector<1x2x32xf32> to vector<2x32xf32>
    %385 = vector.shape_cast %374 : vector<2x32xf32> to vector<1x2x32xf32>
    tpu.vector_store %arg11[%c1_159, %c0_160, %c0_161], %385 {strides = array<i32>} : memref<2x2x32xf32, #tpu.memory_space<vmem>>, vector<1x2x32xf32>,
    %c0_162 = arith.constant 0 : index
    %c0_163 = arith.constant 0 : index
    %c0_164 = arith.constant 0 : index
    %386 = vector.load %arg9[%c0_162, %c0_163, %c0_164] : memref<2x8x32xf32, #tpu.memory_space<vmem>>, vector<2x8x32xf32>
    %c0_165 = arith.constant 0 : index
    %c0_166 = arith.constant 0 : index
    %387 = vector.load %arg6[%c0_165, %c0_166] : memref<32x8xf32, #tpu.memory_space<vmem>>, vector<32x8xf32>
    %cst_167 = arith.constant dense<0.000000e+00> : vector<2x8x8xf32>
    %388 = tpu.matmul %386, %387, %cst_167 {dimension_numbers = #tpu.dot_dimension_numbers<[2], [0], [0, 1], [1], [0, 0, 0, 1, 1, 1], [], []>} : vector<2x8x32xf32>, vector<32x8xf32>, vector<2x8x8xf32> -> vector<2x8x8xf32>
    %c0_168 = arith.constant 0 : index
    %c0_169 = arith.constant 0 : index
    %389 = vector.load %arg7[%c0_168, %c0_169] : memref<1x8xf32, #tpu.memory_space<vmem>>, vector<1x8xf32>
    %390 = vector.shape_cast %389 : vector<1x8xf32> to vector<1x1x8xf32>
    %391 = vector.broadcast %390 : vector<1x1x8xf32> to vector<2x8x8xf32>
    %392 = arith.addf %388, %391 : vector<2x8x8xf32>
    %c0_170 = arith.constant 0 : index
    %c0_171 = arith.constant 0 : index
    %c0_172 = arith.constant 0 : index
    %393 = vector.load %arg8[%c0_170, %c0_171, %c0_172] : memref<2x8x8xf32, #tpu.memory_space<vmem>>, vector<2x8x8xf32>
    tpu.vector_store %arg8[%c0_170, %c0_171, %c0_172], %392 {strides = array<i32>} : memref<2x8x8xf32, #tpu.memory_space<vmem>>, vector<2x8x8xf32>,
    return
  }
}

</mosaic_0001>

<llo_original>
// kernel: tpu_custom_call.1
$region0: #{tpu_custom_call.1}
  #allocation0 [shape = 'u32[]', space=smem, size = 0x4, offset = 0x4, fixed_abs, tag = 'smem constant byte address 0x4 - core index']
  #allocation1 [shape = 'u32[72,128]{1,0:T(1,128)}', space=vmem, size = 0x9000, scoped, tag = 'internal scratch']
  #allocation2 [shape = 'f32[8,2,32]{2,1,0:T(2,128)}', space=vmem, size = 0x2000, scoped, tag = 'scratch operand']
  #allocation3 [shape = 'f32[8,2,128]{2,1,0:T(2,128)}', space=vmem, size = 0x2000, scoped, tag = 'scratch operand']
  %s0 = inlined_call_operand.vmem [shape: f32[8,2,128], index: 0, kind: input, shape index: {}]
  %s1 = inlined_call_operand.vmem [shape: f32[2,2,32], index: 1, kind: input, shape index: {}]
  %s2 = inlined_call_operand.vmem [shape: f32[2,2,32], index: 2, kind: input, shape index: {}]
  %s3 = inlined_call_operand.hbm [shape: f32[2,32,128], index: 3, kind: input, shape index: {}]
  %s4 = inlined_call_operand.hbm [shape: f32[2,32,128], index: 4, kind: input, shape index: {}]
  %s5 = inlined_call_operand.vmem [shape: f32[2,1,128], index: 5, kind: input, shape index: {}]
  %s6 = inlined_call_operand.vmem [shape: f32[32,8], index: 6, kind: input, shape index: {}]
  %s7 = inlined_call_operand.vmem [shape: f32[1,8], index: 7, kind: input, shape index: {}]
  %s8 = inlined_call_operand.hbm [shape: f32[2,8,8], index: 8, kind: output, shape index: {0}]
  %s9 = inlined_call_operand.hbm [shape: f32[2,8,32], index: 9, kind: output, shape index: {1}]
  %s10 = inlined_call_operand.hbm [shape: f32[2,2,32], index: 10, kind: output, shape index: {2}]
  %s11 = inlined_call_operand.hbm [shape: f32[2,2,32], index: 11, kind: output, shape index: {3}]
  %12 = xla_tuple %s8, %s9, %s10, %s11
  %s13 = sld [smem:[#allocation0]]
  $region74: #{tpu_custom_call.1} parent=0
    _
  %s15 = ssub.s32 1, %s13
  %s16 = scalar_select 0, %s15, %s13
  $region1: #{tpu_custom_call.1} parent=0
    #allocation4 [shape = 'u8[32768]{0}', space=vmem, size = 0x8000, scoped, tag = 'input window, operand 3, single buffered']
    #allocation5 [shape = 's32[1]{0}', space=sflag, size = 0x4, scoped, tag = 'scoped memory for tpu_custom_call.1']
    #allocation6 [shape = 's32[1]{0}', space=sflag, size = 0x4, scoped, tag = 'scoped memory for tpu_custom_call.1']
    #allocation7 [shape = 'u8[32768]{0}', space=vmem, size = 0x8000, scoped, tag = 'input window, operand 4, single buffered']
    #allocation8 [shape = 's32[1]{0}', space=sflag, size = 0x4, scoped, tag = 'scoped memory for tpu_custom_call.1']
    #allocation9 [shape = 'u8[8192]{0}', space=vmem, size = 0x2000, scoped, tag = 'output window, operand 0, single buffered']
    #allocation10 [shape = 'u8[8192]{0}', space=vmem, size = 0x2000, scoped, tag = 'output window, operand 1, single buffered']
    #allocation11 [shape = 's32[1]{0}', space=sflag, size = 0x4, scoped, tag = 'scoped memory for tpu_custom_call.1']
    #allocation12 [shape = 'u8[2048]{0}', space=vmem, size = 0x800, scoped, tag = 'output window, operand 2, single buffered']
    #allocation13 [shape = 'u8[2048]{0}', space=vmem, size = 0x800, scoped, tag = 'output window, operand 3, single buffered']
    #allocation14 [shape = 's32[1]{0}', space=sflag, size = 0x4, scoped, tag = 'scoped memory for tpu_custom_call.1']
    %17 = vsyncpa [#allocation5], 0
    %18 = vsyncpa [#allocation8], 0
    %19 = vsyncpa [#allocation6], 0
    %20 = vsyncpa [#allocation11], 0
    %21 = vsyncpa [#allocation14], 0
    // Predicated region
    $region2: #{tpu_custom_call.1} parent=1 // pred_check
      _
    $region3: #{tpu_custom_call.1} parent=1 // pred_check_branch
      %23 = sbr.rel (0) target = $region5
    $region4: #{tpu_custom_call.1} parent=1 // pred_region
      _
    $region5: #{tpu_custom_call.1} parent=1 // pred_fallthru
      _
    // Predicated region
    $region6: #{tpu_custom_call.1} parent=1 // pred_check
      _
    $region7: #{tpu_custom_call.1} parent=1 // pred_check_branch
      %25 = sbr.rel (0) target = $region9
    $region8: #{tpu_custom_call.1} parent=1 // pred_region
      _
    $region9: #{tpu_custom_call.1} parent=1 // pred_fallthru
      _
    // Predicated region
    $region10: #{tpu_custom_call.1} parent=1 // pred_check
      _
    $region11: #{tpu_custom_call.1} parent=1 // pred_check_branch
      %27 = sbr.rel (0) target = $region13
    $region12: #{tpu_custom_call.1} parent=1 // pred_region
      _
    $region13: #{tpu_custom_call.1} parent=1 // pred_fallthru
      _
    // Predicated region
    $region14: #{tpu_custom_call.1} parent=1 // pred_check
      _
    $region15: #{tpu_custom_call.1} parent=1 // pred_check_branch
      %29 = sbr.rel (0) target = $region17
    $region16: #{tpu_custom_call.1} parent=1 // pred_region
      %31 = vsyncadd [#allocation5], 0
      %s32 = sshll.u32 %s3, 4
      %s33 = int_to_ptr.hbm [resolvable:$true] %s32
      %s34 = sshll.u32 [#allocation4], 4
      %s35 = int_to_ptr.vmem [resolvable:$true] %s34
      %40 = dma.hbm_to_vmem [thread:$0]  %s33, 1024, %s35, [#allocation5], 128, 128, 8
    $region17: #{tpu_custom_call.1} parent=1 // pred_fallthru
      _
    // Predicated region
    $region18: #{tpu_custom_call.1} parent=1 // pred_check
      _
    $region19: #{tpu_custom_call.1} parent=1 // pred_check_branch
      %42 = sbr.rel (0) target = $region21
    $region20: #{tpu_custom_call.1} parent=1 // pred_region
      %44 = vsyncadd [#allocation8], 0
      %s45 = sshll.u32 %s4, 4
      %s46 = int_to_ptr.hbm [resolvable:$true] %s45
      %s47 = sshll.u32 [#allocation7], 4
      %s48 = int_to_ptr.vmem [resolvable:$true] %s47
      %53 = dma.hbm_to_vmem [thread:$0]  %s46, 1024, %s48, [#allocation8], 128, 128, 8
    $region21: #{tpu_custom_call.1} parent=1 // pred_fallthru
      _
    // Predicated region
    $region22: #{tpu_custom_call.1} parent=1 // pred_check
      _
    $region23: #{tpu_custom_call.1} parent=1 // pred_check_branch
      %55 = sbr.rel (0) target = $region25
    $region24: #{tpu_custom_call.1} parent=1 // pred_region
      _
    $region25: #{tpu_custom_call.1} parent=1 // pred_fallthru
      _
    // Predicated region
    $region26: #{tpu_custom_call.1} parent=1 // pred_check
      _
    $region27: #{tpu_custom_call.1} parent=1 // pred_check_branch
      %57 = sbr.rel (0) target = $region29
    $region28: #{tpu_custom_call.1} parent=1 // pred_region
      _
    $region29: #{tpu_custom_call.1} parent=1 // pred_fallthru
      _
    // Predicated region
    $region30: #{tpu_custom_call.1} parent=1 // pred_check
      _
    $region31: #{tpu_custom_call.1} parent=1 // pred_check_branch
      %59 = sbr.rel (0) target = $region33
    $region32: #{tpu_custom_call.1} parent=1 // pred_region
      _
    $region33: #{tpu_custom_call.1} parent=1 // pred_fallthru
      _
    // Predicated region
    $region34: #{tpu_custom_call.1} parent=1 // pred_check
      _
    $region35: #{tpu_custom_call.1} parent=1 // pred_check_branch
      %61 = sbr.rel (0) target = $region37
    $region36: #{tpu_custom_call.1} parent=1 // pred_region
      %63 = dma.done [#allocation5], 1024
    $region37: #{tpu_custom_call.1} parent=1 // pred_fallthru
      _
    // Predicated region
    $region38: #{tpu_custom_call.1} parent=1 // pred_check
      _
    $region39: #{tpu_custom_call.1} parent=1 // pred_check_branch
      %65 = sbr.rel (0) target = $region41
    $region40: #{tpu_custom_call.1} parent=1 // pred_region
      %67 = dma.done [#allocation8], 1024
    $region41: #{tpu_custom_call.1} parent=1 // pred_fallthru
      _
    %v68 = vld [vmem:[#allocation7] sm:$0xff]
    %v69 = vld [vmem:[#allocation7 + $0x8] sm:$0xff]
    %v70 = vld [vmem:[#allocation7 + $0x10] sm:$0xff]
    %v71 = vld [vmem:[#allocation7 + $0x18] sm:$0xff]
    %v72 = vld [vmem:[%s1] sm:$0x3]
    %v73 = vld [vmem:[%s2] sm:$0x3]
    %v74 = vld [vmem:[%s0] sm:$0x3]
    %vm75 = vcmask 261120
    %v77 = vsel %vm75, %v72, 0
    %79 = vmatpush.msra.mxu0 0.0
    %80 = vmatpush.msra.mxu0 0.0
    %81 = vmatpush.msra.mxu0 0.0
    %82 = vmatpush.msra.mxu0 0.0
    %83 = vmatpush.msra.mxu0 0.0
    %84 = vmatpush.msra.mxu0 0.0
    %85 = vmatpush.msra.mxu0 0.0
    %86 = vmatpush.msra.mxu0 0.0
    %87 = vmatpush.msra.mxu0 0.0
    %88 = vmatpush.msra.mxu0 0.0
    %89 = vmatpush.msra.mxu0 0.0
    %90 = vmatpush.msra.mxu0 0.0
    %91 = vmatpush.msra.mxu0 %v71
    %92 = vmatpush.msra.mxu0 %v70
    %93 = vmatpush.msra.mxu0 %v69
    %94 = vmatpush.msra.mxu0 %v68
    %95 = vmatmul.f32.gmra.mxu0 %v77
    %v96 = vpop.f32.mrf.mxu0
    %v97 = vadd.f32 0.0, %v96
    %98 = vdwg.mxu0
    %v99 = vadd.f32 %v74, %v97
    %v100 = vxor.u32 %v99, 2147483648
    %v101 = vmul.f32 %v100, 1.442695
    %v102 = vpow.pop %v101
    %v103 = vadd.f32 %v102, 1.0
    %v104 = vrcp.pop %v103
    %v105 = vmul.f32 %v103, %v104
    %v106 = vsub.f32 1.0, %v105
    %v107 = vmul.f32 %v104, %v106
    %v108 = vadd.f32 %v104, %v107
    %vm109 = vweird.f32 %v103
    %vm110 = vweird.f32 %v104
    %vm111 = vmor %vm109, %vm110
    %v112 = vsel %vm111, %v104, %v108
    %v113 = vand.u32 2147483647, %v103
    %vm114 = vcmp.eq.f32.partialorder %v113, 8.507059e+37
    %v115 = vand.u32 %v103, 2147483648
    %v116 = vor.u32 1.1754944e-38, %v115
    %v117 = vsel %vm114, %v116, %v112
    %v118 = vmul.f32 1.0, %v117
    %v119 = vtanh.pop %v99
    %121 = vrot.lane.b32.xlu0 %v73, 32
    %v122 = vpop.permute.xlu0 %121
    %v124 = vmul.f32 %v118, %v122
    %126 = vrot.lane.b32.xlu0 %v119, 64
    %v127 = vpop.permute.xlu0 %126
    %v129 = vmul.f32 %v118, %v127
    %131 = vrot.lane.b32.xlu0 %v129, 32
    %v132 = vpop.permute.xlu0 %131
    %v134 = vadd.f32 %v124, %v132
    %v135 = vtanh.pop %v134
    %137 = vrot.lane.b32.xlu0 %v135, 64
    %v138 = vpop.permute.xlu0 %137
    %v140 = vmul.f32 %v118, %v138
    %142 = vrot.lane.b32.xlu0 %v140, 32
    %v143 = vpop.permute.xlu0 %142
    %vm145 = vcmask 254976
    %146 = vst.msk [vmem:[#allocation2] sm:$0x3] %vm145, %v143
    %s147 = scalar_lea.vmem %s0, 2
    %v148 = vld [vmem:[%s147] sm:$0x3]
    %v149 = vsel %vm75, %v143, 0
    %151 = vmatpush.msra.mxu0 0.0
    %152 = vmatpush.msra.mxu0 0.0
    %153 = vmatpush.msra.mxu0 0.0
    %154 = vmatpush.msra.mxu0 0.0
    %155 = vmatpush.msra.mxu0 0.0
    %156 = vmatpush.msra.mxu0 0.0
    %157 = vmatpush.msra.mxu0 0.0
    %158 = vmatpush.msra.mxu0 0.0
    %159 = vmatpush.msra.mxu0 0.0
    %160 = vmatpush.msra.mxu0 0.0
    %161 = vmatpush.msra.mxu0 0.0
    %162 = vmatpush.msra.mxu0 0.0
    %163 = vmatpush.msra.mxu0 %v71
    %164 = vmatpush.msra.mxu0 %v70
    %165 = vmatpush.msra.mxu0 %v69
    %166 = vmatpush.msra.mxu0 %v68
    %167 = vmatmul.f32.gmra.mxu0 %v149
    %v168 = vpop.f32.mrf.mxu0
    %v169 = vadd.f32 0.0, %v168
    %170 = vdwg.mxu0
    %v171 = vadd.f32 %v148, %v169
    %v172 = vxor.u32 %v171, 2147483648
    %v173 = vmul.f32 %v172, 1.442695
    %v174 = vpow.pop %v173
    %v175 = vadd.f32 %v174, 1.0
    %v176 = vrcp.pop %v175
    %v177 = vmul.f32 %v175, %v176
    %v178 = vsub.f32 1.0, %v177
    %v179 = vmul.f32 %v176, %v178
    %v180 = vadd.f32 %v176, %v179
    %vm181 = vweird.f32 %v175
    %vm182 = vweird.f32 %v176
    %vm183 = vmor %vm181, %vm182
    %v184 = vsel %vm183, %v176, %v180
    %v185 = vand.u32 2147483647, %v175
    %vm186 = vcmp.eq.f32.partialorder %v185, 8.507059e+37
    %v187 = vand.u32 %v175, 2147483648
    %v188 = vor.u32 1.1754944e-38, %v187
    %v189 = vsel %vm186, %v188, %v184
    %v190 = vmul.f32 1.0, %v189
    %v191 = vtanh.pop %v171
    %v192 = vmul.f32 %v190, %v134
    %194 = vrot.lane.b32.xlu0 %v191, 64
    %v195 = vpop.permute.xlu0 %194
    %v197 = vmul.f32 %v190, %v195
    %199 = vrot.lane.b32.xlu0 %v197, 32
    %v200 = vpop.permute.xlu0 %199
    %v202 = vadd.f32 %v192, %v200
    %v203 = vtanh.pop %v202
    %205 = vrot.lane.b32.xlu0 %v203, 64
    %v206 = vpop.permute.xlu0 %205
    %v208 = vmul.f32 %v190, %v206
    %210 = vrot.lane.b32.xlu0 %v208, 32
    %v211 = vpop.permute.xlu0 %210
    %s213 = scalar_lea.vmem [#allocation2], 2
    %214 = vst.msk [vmem:[%s213] sm:$0x3] %vm145, %v211
    %s215 = scalar_lea.vmem %s0, 4
    %v216 = vld [vmem:[%s215] sm:$0x3]
    %v217 = vsel %vm75, %v211, 0
    %219 = vmatpush.msra.mxu0 0.0
    %220 = vmatpush.msra.mxu0 0.0
    %221 = vmatpush.msra.mxu0 0.0
    %222 = vmatpush.msra.mxu0 0.0
    %223 = vmatpush.msra.mxu0 0.0
    %224 = vmatpush.msra.mxu0 0.0
    %225 = vmatpush.msra.mxu0 0.0
    %226 = vmatpush.msra.mxu0 0.0
    %227 = vmatpush.msra.mxu0 0.0
    %228 = vmatpush.msra.mxu0 0.0
    %229 = vmatpush.msra.mxu0 0.0
    %230 = vmatpush.msra.mxu0 0.0
    %231 = vmatpush.msra.mxu0 %v71
    %232 = vmatpush.msra.mxu0 %v70
    %233 = vmatpush.msra.mxu0 %v69
    %234 = vmatpush.msra.mxu0 %v68
    %235 = vmatmul.f32.gmra.mxu0 %v217
    %v236 = vpop.f32.mrf.mxu0
    %v237 = vadd.f32 0.0, %v236
    %238 = vdwg.mxu0
    %v239 = vadd.f32 %v216, %v237
    %v240 = vxor.u32 %v239, 2147483648
    %v241 = vmul.f32 %v240, 1.442695
    %v242 = vpow.pop %v241
    %v243 = vadd.f32 %v242, 1.0
    %v244 = vrcp.pop %v243
    %v245 = vmul.f32 %v243, %v244
    %v246 = vsub.f32 1.0, %v245
    %v247 = vmul.f32 %v244, %v246
    %v248 = vadd.f32 %v244, %v247
    %vm249 = vweird.f32 %v243
    %vm250 = vweird.f32 %v244
    %vm251 = vmor %vm249, %vm250
    %v252 = vsel %vm251, %v244, %v248
    %v253 = vand.u32 2147483647, %v243
    %vm254 = vcmp.eq.f32.partialorder %v253, 8.507059e+37
    %v255 = vand.u32 %v243, 2147483648
    %v256 = vor.u32 1.1754944e-38, %v255
    %v257 = vsel %vm254, %v256, %v252
    %v258 = vmul.f32 1.0, %v257
    %v259 = vtanh.pop %v239
    %v260 = vmul.f32 %v258, %v202
    %262 = vrot.lane.b32.xlu0 %v259, 64
    %v263 = vpop.permute.xlu0 %262
    %v265 = vmul.f32 %v258, %v263
    %267 = vrot.lane.b32.xlu0 %v265, 32
    %v268 = vpop.permute.xlu0 %267
    %v270 = vadd.f32 %v260, %v268
    %v271 = vtanh.pop %v270
    %273 = vrot.lane.b32.xlu0 %v271, 64
    %v274 = vpop.permute.xlu0 %273
    %v276 = vmul.f32 %v258, %v274
    %278 = vrot.lane.b32.xlu0 %v276, 32
    %v279 = vpop.permute.xlu0 %278
    %s281 = scalar_lea.vmem [#allocation2], 4
    %282 = vst.msk [vmem:[%s281] sm:$0x3] %vm145, %v279
    %s283 = scalar_lea.vmem %s0, 6
    %v284 = vld [vmem:[%s283] sm:$0x3]
    %v285 = vsel %vm75, %v279, 0
    %287 = vmatpush.msra.mxu0 0.0
    %288 = vmatpush.msra.mxu0 0.0
    %289 = vmatpush.msra.mxu0 0.0
    %290 = vmatpush.msra.mxu0 0.0
    %291 = vmatpush.msra.mxu0 0.0
    %292 = vmatpush.msra.mxu0 0.0
    %293 = vmatpush.msra.mxu0 0.0
    %294 = vmatpush.msra.mxu0 0.0
    %295 = vmatpush.msra.mxu0 0.0
    %296 = vmatpush.msra.mxu0 0.0
    %297 = vmatpush.msra.mxu0 0.0
    %298 = vmatpush.msra.mxu0 0.0
    %299 = vmatpush.msra.mxu0 %v71
    %300 = vmatpush.msra.mxu0 %v70
    %301 = vmatpush.msra.mxu0 %v69
    %302 = vmatpush.msra.mxu0 %v68
    %303 = vmatmul.f32.gmra.mxu0 %v285
    %v304 = vpop.f32.mrf.mxu0
    %v305 = vadd.f32 0.0, %v304
    %306 = vdwg.mxu0
    %v307 = vadd.f32 %v284, %v305
    %v308 = vxor.u32 %v307, 2147483648
    %v309 = vmul.f32 %v308, 1.442695
    %v310 = vpow.pop %v309
    %v311 = vadd.f32 %v310, 1.0
    %v312 = vrcp.pop %v311
    %v313 = vmul.f32 %v311, %v312
    %v314 = vsub.f32 1.0, %v313
    %v315 = vmul.f32 %v312, %v314
    %v316 = vadd.f32 %v312, %v315
    %vm317 = vweird.f32 %v311
    %vm318 = vweird.f32 %v312
    %vm319 = vmor %vm317, %vm318
    %v320 = vsel %vm319, %v312, %v316
    %v321 = vand.u32 2147483647, %v311
    %vm322 = vcmp.eq.f32.partialorder %v321, 8.507059e+37
    %v323 = vand.u32 %v311, 2147483648
    %v324 = vor.u32 1.1754944e-38, %v323
    %v325 = vsel %vm322, %v324, %v320
    %v326 = vmul.f32 1.0, %v325
    %v327 = vtanh.pop %v307
    %v328 = vmul.f32 %v326, %v270
    %330 = vrot.lane.b32.xlu0 %v327, 64
    %v331 = vpop.permute.xlu0 %330
    %v333 = vmul.f32 %v326, %v331
    %335 = vrot.lane.b32.xlu0 %v333, 32
    %v336 = vpop.permute.xlu0 %335
    %v338 = vadd.f32 %v328, %v336
    %v339 = vtanh.pop %v338
    %341 = vrot.lane.b32.xlu0 %v339, 64
    %v342 = vpop.permute.xlu0 %341
    %v344 = vmul.f32 %v326, %v342
    %346 = vrot.lane.b32.xlu0 %v344, 32
    %v347 = vpop.permute.xlu0 %346
    %s349 = scalar_lea.vmem [#allocation2], 6
    %350 = vst.msk [vmem:[%s349] sm:$0x3] %vm145, %v347
    %s351 = scalar_lea.vmem %s0, 8
    %v352 = vld [vmem:[%s351] sm:$0x3]
    %v353 = vsel %vm75, %v347, 0
    %355 = vmatpush.msra.mxu0 0.0
    %356 = vmatpush.msra.mxu0 0.0
    %357 = vmatpush.msra.mxu0 0.0
    %358 = vmatpush.msra.mxu0 0.0
    %359 = vmatpush.msra.mxu0 0.0
    %360 = vmatpush.msra.mxu0 0.0
    %361 = vmatpush.msra.mxu0 0.0
    %362 = vmatpush.msra.mxu0 0.0
    %363 = vmatpush.msra.mxu0 0.0
    %364 = vmatpush.msra.mxu0 0.0
    %365 = vmatpush.msra.mxu0 0.0
    %366 = vmatpush.msra.mxu0 0.0
    %367 = vmatpush.msra.mxu0 %v71
    %368 = vmatpush.msra.mxu0 %v70
    %369 = vmatpush.msra.mxu0 %v69
    %370 = vmatpush.msra.mxu0 %v68
    %371 = vmatmul.f32.gmra.mxu0 %v353
    %v372 = vpop.f32.mrf.mxu0
    %v373 = vadd.f32 0.0, %v372
    %374 = vdwg.mxu0
    %v375 = vadd.f32 %v352, %v373
    %v376 = vxor.u32 %v375, 2147483648
    %v377 = vmul.f32 %v376, 1.442695
    %v378 = vpow.pop %v377
    %v379 = vadd.f32 %v378, 1.0
    %v380 = vrcp.pop %v379
    %v381 = vmul.f32 %v379, %v380
    %v382 = vsub.f32 1.0, %v381
    %v383 = vmul.f32 %v380, %v382
    %v384 = vadd.f32 %v380, %v383
    %vm385 = vweird.f32 %v379
    %vm386 = vweird.f32 %v380
    %vm387 = vmor %vm385, %vm386
    %v388 = vsel %vm387, %v380, %v384
    %v389 = vand.u32 2147483647, %v379
    %vm390 = vcmp.eq.f32.partialorder %v389, 8.507059e+37
    %v391 = vand.u32 %v379, 2147483648
    %v392 = vor.u32 1.1754944e-38, %v391
    %v393 = vsel %vm390, %v392, %v388
    %v394 = vmul.f32 1.0, %v393
    %v395 = vtanh.pop %v375
    %v396 = vmul.f32 %v394, %v338
    %398 = vrot.lane.b32.xlu0 %v395, 64
    %v399 = vpop.permute.xlu0 %398
    %v401 = vmul.f32 %v394, %v399
    %403 = vrot.lane.b32.xlu0 %v401, 32
    %v404 = vpop.permute.xlu0 %403
    %v406 = vadd.f32 %v396, %v404
    %v407 = vtanh.pop %v406
    %409 = vrot.lane.b32.xlu0 %v407, 64
    %v410 = vpop.permute.xlu0 %409
    %v412 = vmul.f32 %v394, %v410
    %414 = vrot.lane.b32.xlu0 %v412, 32
    %v415 = vpop.permute.xlu0 %414
    %s417 = scalar_lea.vmem [#allocation2], 8
    %418 = vst.msk [vmem:[%s417] sm:$0x3] %vm145, %v415
    %s419 = scalar_lea.vmem %s0, 10
    %v420 = vld [vmem:[%s419] sm:$0x3]
    %v421 = vsel %vm75, %v415, 0
    %423 = vmatpush.msra.mxu0 0.0
    %424 = vmatpush.msra.mxu0 0.0
    %425 = vmatpush.msra.mxu0 0.0
    %426 = vmatpush.msra.mxu0 0.0
    %427 = vmatpush.msra.mxu0 0.0
    %428 = vmatpush.msra.mxu0 0.0
    %429 = vmatpush.msra.mxu0 0.0
    %430 = vmatpush.msra.mxu0 0.0
    %431 = vmatpush.msra.mxu0 0.0
    %432 = vmatpush.msra.mxu0 0.0
    %433 = vmatpush.msra.mxu0 0.0
    %434 = vmatpush.msra.mxu0 0.0
    %435 = vmatpush.msra.mxu0 %v71
    %436 = vmatpush.msra.mxu0 %v70
    %437 = vmatpush.msra.mxu0 %v69
    %438 = vmatpush.msra.mxu0 %v68
    %439 = vmatmul.f32.gmra.mxu0 %v421
    %v440 = vpop.f32.mrf.mxu0
    %v441 = vadd.f32 0.0, %v440
    %442 = vdwg.mxu0
    %v443 = vadd.f32 %v420, %v441
    %v444 = vxor.u32 %v443, 2147483648
    %v445 = vmul.f32 %v444, 1.442695
    %v446 = vpow.pop %v445
    %v447 = vadd.f32 %v446, 1.0
    %v448 = vrcp.pop %v447
    %v449 = vmul.f32 %v447, %v448
    %v450 = vsub.f32 1.0, %v449
    %v451 = vmul.f32 %v448, %v450
    %v452 = vadd.f32 %v448, %v451
    %vm453 = vweird.f32 %v447
    %vm454 = vweird.f32 %v448
    %vm455 = vmor %vm453, %vm454
    %v456 = vsel %vm455, %v448, %v452
    %v457 = vand.u32 2147483647, %v447
    %vm458 = vcmp.eq.f32.partialorder %v457, 8.507059e+37
    %v459 = vand.u32 %v447, 2147483648
    %v460 = vor.u32 1.1754944e-38, %v459
    %v461 = vsel %vm458, %v460, %v456
    %v462 = vmul.f32 1.0, %v461
    %v463 = vtanh.pop %v443
    %v464 = vmul.f32 %v462, %v406
    %466 = vrot.lane.b32.xlu0 %v463, 64
    %v467 = vpop.permute.xlu0 %466
    %v469 = vmul.f32 %v462, %v467
    %471 = vrot.lane.b32.xlu0 %v469, 32
    %v472 = vpop.permute.xlu0 %471
    %v474 = vadd.f32 %v464, %v472
    %v475 = vtanh.pop %v474
    %477 = vrot.lane.b32.xlu0 %v475, 64
    %v478 = vpop.permute.xlu0 %477
    %v480 = vmul.f32 %v462, %v478
    %482 = vrot.lane.b32.xlu0 %v480, 32
    %v483 = vpop.permute.xlu0 %482
    %s485 = scalar_lea.vmem [#allocation2], 10
    %486 = vst.msk [vmem:[%s485] sm:$0x3] %vm145, %v483
    %s487 = scalar_lea.vmem %s0, 12
    %v488 = vld [vmem:[%s487] sm:$0x3]
    %v489 = vsel %vm75, %v483, 0
    %491 = vmatpush.msra.mxu0 0.0
    %492 = vmatpush.msra.mxu0 0.0
    %493 = vmatpush.msra.mxu0 0.0
    %494 = vmatpush.msra.mxu0 0.0
    %495 = vmatpush.msra.mxu0 0.0
    %496 = vmatpush.msra.mxu0 0.0
    %497 = vmatpush.msra.mxu0 0.0
    %498 = vmatpush.msra.mxu0 0.0
    %499 = vmatpush.msra.mxu0 0.0
    %500 = vmatpush.msra.mxu0 0.0
    %501 = vmatpush.msra.mxu0 0.0
    %502 = vmatpush.msra.mxu0 0.0
    %503 = vmatpush.msra.mxu0 %v71
    %504 = vmatpush.msra.mxu0 %v70
    %505 = vmatpush.msra.mxu0 %v69
    %506 = vmatpush.msra.mxu0 %v68
    %507 = vmatmul.f32.gmra.mxu0 %v489
    %v508 = vpop.f32.mrf.mxu0
    %v509 = vadd.f32 0.0, %v508
    %510 = vdwg.mxu0
    %v511 = vadd.f32 %v488, %v509
    %v512 = vxor.u32 %v511, 2147483648
    %v513 = vmul.f32 %v512, 1.442695
    %v514 = vpow.pop %v513
    %v515 = vadd.f32 %v514, 1.0
    %v516 = vrcp.pop %v515
    %v517 = vmul.f32 %v515, %v516
    %v518 = vsub.f32 1.0, %v517
    %v519 = vmul.f32 %v516, %v518
    %v520 = vadd.f32 %v516, %v519
    %vm521 = vweird.f32 %v515
    %vm522 = vweird.f32 %v516
    %vm523 = vmor %vm521, %vm522
    %v524 = vsel %vm523, %v516, %v520
    %v525 = vand.u32 2147483647, %v515
    %vm526 = vcmp.eq.f32.partialorder %v525, 8.507059e+37
    %v527 = vand.u32 %v515, 2147483648
    %v528 = vor.u32 1.1754944e-38, %v527
    %v529 = vsel %vm526, %v528, %v524
    %v530 = vmul.f32 1.0, %v529
    %v531 = vtanh.pop %v511
    %v532 = vmul.f32 %v530, %v474
    %534 = vrot.lane.b32.xlu0 %v531, 64
    %v535 = vpop.permute.xlu0 %534
    %v537 = vmul.f32 %v530, %v535
    %539 = vrot.lane.b32.xlu0 %v537, 32
    %v540 = vpop.permute.xlu0 %539
    %v542 = vadd.f32 %v532, %v540
    %v543 = vtanh.pop %v542
    %545 = vrot.lane.b32.xlu0 %v543, 64
    %v546 = vpop.permute.xlu0 %545
    %v548 = vmul.f32 %v530, %v546
    %550 = vrot.lane.b32.xlu0 %v548, 32
    %v551 = vpop.permute.xlu0 %550
    %s553 = scalar_lea.vmem [#allocation2], 12
    %554 = vst.msk [vmem:[%s553] sm:$0x3] %vm145, %v551
    %s555 = scalar_lea.vmem %s0, 14
    %v556 = vld [vmem:[%s555] sm:$0x3]
    %v557 = vsel %vm75, %v551, 0
    %559 = vmatpush.msra.mxu0 0.0
    %560 = vmatpush.msra.mxu0 0.0
    %561 = vmatpush.msra.mxu0 0.0
    %562 = vmatpush.msra.mxu0 0.0
    %563 = vmatpush.msra.mxu0 0.0
    %564 = vmatpush.msra.mxu0 0.0
    %565 = vmatpush.msra.mxu0 0.0
    %566 = vmatpush.msra.mxu0 0.0
    %567 = vmatpush.msra.mxu0 0.0
    %568 = vmatpush.msra.mxu0 0.0
    %569 = vmatpush.msra.mxu0 0.0
    %570 = vmatpush.msra.mxu0 0.0
    %571 = vmatpush.msra.mxu0 %v71
    %572 = vmatpush.msra.mxu0 %v70
    %573 = vmatpush.msra.mxu0 %v69
    %574 = vmatpush.msra.mxu0 %v68
    %575 = vmatmul.f32.gmra.mxu0 %v557
    %v576 = vpop.f32.mrf.mxu0
    %v577 = vadd.f32 0.0, %v576
    %578 = vdwg.mxu0
    %v579 = vadd.f32 %v556, %v577
    %v580 = vxor.u32 %v579, 2147483648
    %v581 = vmul.f32 %v580, 1.442695
    %v582 = vpow.pop %v581
    %v583 = vadd.f32 %v582, 1.0
    %v584 = vrcp.pop %v583
    %v585 = vmul.f32 %v583, %v584
    %v586 = vsub.f32 1.0, %v585
    %v587 = vmul.f32 %v584, %v586
    %v588 = vadd.f32 %v584, %v587
    %vm589 = vweird.f32 %v583
    %vm590 = vweird.f32 %v584
    %vm591 = vmor %vm589, %vm590
    %v592 = vsel %vm591, %v584, %v588
    %v593 = vand.u32 2147483647, %v583
    %vm594 = vcmp.eq.f32.partialorder %v593, 8.507059e+37
    %v595 = vand.u32 %v583, 2147483648
    %v596 = vor.u32 1.1754944e-38, %v595
    %v597 = vsel %vm594, %v596, %v592
    %v598 = vmul.f32 1.0, %v597
    %v599 = vtanh.pop %v579
    %v600 = vmul.f32 %v598, %v542
    %602 = vrot.lane.b32.xlu0 %v599, 64
    %v603 = vpop.permute.xlu0 %602
    %v605 = vmul.f32 %v598, %v603
    %607 = vrot.lane.b32.xlu0 %v605, 32
    %v608 = vpop.permute.xlu0 %607
    %v610 = vadd.f32 %v600, %v608
    %v611 = vtanh.pop %v610
    %613 = vrot.lane.b32.xlu0 %v611, 64
    %v614 = vpop.permute.xlu0 %613
    %v616 = vmul.f32 %v598, %v614
    %618 = vrot.lane.b32.xlu0 %v616, 32
    %v619 = vpop.permute.xlu0 %618
    %s621 = scalar_lea.vmem [#allocation2], 14
    %622 = vst.msk [vmem:[%s621] sm:$0x3] %vm145, %v619
    %623 = vst.msk [vmem:[#allocation12] sm:$0x3] %vm145, %v619
    %625 = vrot.lane.b32.xlu0 %v610, 96
    %v626 = vpop.permute.xlu0 %625
    %628 = vst.msk [vmem:[#allocation13] sm:$0x3] %vm145, %v626
    %v629 = vld [vmem:[#allocation2] sm:$0x3]
    %v630 = vld [vmem:[#allocation2 + $0x2] sm:$0x3]
    %v631 = vld [vmem:[#allocation2 + $0x4] sm:$0x3]
    %v632 = vld [vmem:[#allocation2 + $0x6] sm:$0x3]
    %v633 = vld [vmem:[#allocation2 + $0x8] sm:$0x3]
    %v634 = vld [vmem:[#allocation2 + $0xa] sm:$0x3]
    %v635 = vld [vmem:[#allocation2 + $0xc] sm:$0x3]
    %v636 = vld [vmem:[#allocation2 + $0xe] sm:$0x3]
    %s637 = scalar_lea.vmem [#allocation4], 32
    %v638 = vld [vmem:[%s637] sm:$0xff]
    %v639 = vld [vmem:[%s637 + $0x8] sm:$0xff]
    %v640 = vld [vmem:[%s637 + $0x10] sm:$0xff]
    %v641 = vld [vmem:[%s637 + $0x18] sm:$0xff]
    %s642 = scalar_lea.vmem %s5, 1
    %v643 = vld [vmem:[%s642] sm:$0x1]
    %v645 = vperm.slane %v643, 0
    %654 = vst [vmem:[#allocation1] ss:$4 sm:$0xff] %v629
    %s655 = scalar_lea.vmem [#allocation1], 1
    %656 = vst [vmem:[%s655] ss:$4 sm:$0xff] %v630
    %s657 = scalar_lea.vmem [#allocation1], 2
    %658 = vst [vmem:[%s657] ss:$4 sm:$0xff] %v631
    %s659 = scalar_lea.vmem [#allocation1], 3
    %660 = vst [vmem:[%s659] ss:$4 sm:$0xff] %v632
    %s661 = scalar_lea.vmem [#allocation1], 32
    %662 = vst [vmem:[%s661] ss:$4 sm:$0xff] %v633
    %s663 = scalar_lea.vmem [#allocation1], 33
    %664 = vst [vmem:[%s663] ss:$4 sm:$0xff] %v634
    %s665 = scalar_lea.vmem [#allocation1], 34
    %666 = vst [vmem:[%s665] ss:$4 sm:$0xff] %v635
    %s667 = scalar_lea.vmem [#allocation1], 35
    %668 = vst [vmem:[%s667] ss:$4 sm:$0xff] %v636
    %v669 = vld.sshfl [vmem:[#allocation1] sm:$0xff pattern:$0x73625140]
    %v670 = vld.sshfl [vmem:[#allocation1 + $0x20] sm:$0xff pattern:$0x73625140]
    %671 = vst [vmem:[#allocation1] ss:$4 sm:$0xff] %v645
    %s672 = scalar_lea.vmem [#allocation1], 1
    %673 = vst [vmem:[%s672] ss:$4 sm:$0xff] %v645
    %s674 = scalar_lea.vmem [#allocation1], 2
    %675 = vst [vmem:[%s674] ss:$4 sm:$0xff] %v645
    %s676 = scalar_lea.vmem [#allocation1], 3
    %677 = vst [vmem:[%s676] ss:$4 sm:$0xff] %v645
    %s678 = scalar_lea.vmem [#allocation1], 32
    %679 = vst [vmem:[%s678] ss:$4 sm:$0xff] %v645
    %s680 = scalar_lea.vmem [#allocation1], 33
    %681 = vst [vmem:[%s680] ss:$4 sm:$0xff] %v645
    %s682 = scalar_lea.vmem [#allocation1], 34
    %683 = vst [vmem:[%s682] ss:$4 sm:$0xff] %v645
    %s684 = scalar_lea.vmem [#allocation1], 35
    %685 = vst [vmem:[%s684] ss:$4 sm:$0xff] %v645
    %v686 = vld.sshfl [vmem:[#allocation1] sm:$0xff pattern:$0x73625140]
    %v687 = vld.sshfl [vmem:[#allocation1 + $0x20] sm:$0xff pattern:$0x73625140]
    %v690 = vsel %vm75, %v669, 0
    %v692 = vsel %vm75, %v670, 0
    %694 = vmatpush.msra.mxu0 0.0
    %695 = vmatpush.msra.mxu0 0.0
    %696 = vmatpush.msra.mxu0 0.0
    %697 = vmatpush.msra.mxu0 0.0
    %698 = vmatpush.msra.mxu0 0.0
    %699 = vmatpush.msra.mxu0 0.0
    %700 = vmatpush.msra.mxu0 0.0
    %701 = vmatpush.msra.mxu0 0.0
    %702 = vmatpush.msra.mxu0 0.0
    %703 = vmatpush.msra.mxu0 0.0
    %704 = vmatpush.msra.mxu0 0.0
    %705 = vmatpush.msra.mxu0 0.0
    %706 = vmatpush.msra.mxu0 %v641
    %707 = vmatpush.msra.mxu0 %v640
    %708 = vmatpush.msra.mxu0 %v639
    %709 = vmatpush.msra.mxu0 %v638
    %710 = vmatmul.f32.gmra.mxu0 %v690
    %v711 = vpop.f32.mrf.mxu0
    %v712 = vadd.f32 %v686, %v711
    %713 = vmatmul.f32.gmra.mxu0 %v692
    %v714 = vpop.f32.mrf.mxu0
    %v715 = vadd.f32 %v687, %v714
    %716 = vdwg.mxu0
    %v719 = vrot.slane %v712, 2
    %v720 = vrot.slane %v712, 4
    %v721 = vrot.slane %v712, 6
    %v722 = vrot.slane %v715, 2
    %v723 = vrot.slane %v715, 4
    %v724 = vrot.slane %v715, 6
    %731 = vst [vmem:[#allocation3] sm:$0x3] %v712
    %732 = vst [vmem:[#allocation3 + $0x2] sm:$0x3] %v719
    %733 = vst [vmem:[#allocation3 + $0x4] sm:$0x3] %v720
    %734 = vst [vmem:[#allocation3 + $0x6] sm:$0x3] %v721
    %735 = vst [vmem:[#allocation3 + $0x8] sm:$0x3] %v715
    %736 = vst [vmem:[#allocation3 + $0xa] sm:$0x3] %v722
    %737 = vst [vmem:[#allocation3 + $0xc] sm:$0x3] %v723
    %738 = vst [vmem:[#allocation3 + $0xe] sm:$0x3] %v724
    %s739 = scalar_lea.vmem [#allocation7], 32
    %v740 = vld [vmem:[%s739] sm:$0xff]
    %v741 = vld [vmem:[%s739 + $0x8] sm:$0xff]
    %v742 = vld [vmem:[%s739 + $0x10] sm:$0xff]
    %v743 = vld [vmem:[%s739 + $0x18] sm:$0xff]
    %s744 = scalar_lea.vmem %s1, 2
    %v745 = vld [vmem:[%s744] sm:$0x3]
    %s746 = scalar_lea.vmem %s2, 2
    %v747 = vld [vmem:[%s746] sm:$0x3]
    %v748 = vld [vmem:[#allocation3] sm:$0x3]
    %v750 = vsel %vm75, %v745, 0
    %752 = vmatpush.msra.mxu0 0.0
    %753 = vmatpush.msra.mxu0 0.0
    %754 = vmatpush.msra.mxu0 0.0
    %755 = vmatpush.msra.mxu0 0.0
    %756 = vmatpush.msra.mxu0 0.0
    %757 = vmatpush.msra.mxu0 0.0
    %758 = vmatpush.msra.mxu0 0.0
    %759 = vmatpush.msra.mxu0 0.0
    %760 = vmatpush.msra.mxu0 0.0
    %761 = vmatpush.msra.mxu0 0.0
    %762 = vmatpush.msra.mxu0 0.0
    %763 = vmatpush.msra.mxu0 0.0
    %764 = vmatpush.msra.mxu0 %v743
    %765 = vmatpush.msra.mxu0 %v742
    %766 = vmatpush.msra.mxu0 %v741
    %767 = vmatpush.msra.mxu0 %v740
    %768 = vmatmul.f32.gmra.mxu0 %v750
    %v769 = vpop.f32.mrf.mxu0
    %v770 = vadd.f32 0.0, %v769
    %771 = vdwg.mxu0
    %v772 = vadd.f32 %v748, %v770
    %v773 = vxor.u32 %v772, 2147483648
    %v774 = vmul.f32 %v773, 1.442695
    %v775 = vpow.pop %v774
    %v776 = vadd.f32 %v775, 1.0
    %v777 = vrcp.pop %v776
    %v778 = vmul.f32 %v776, %v777
    %v779 = vsub.f32 1.0, %v778
    %v780 = vmul.f32 %v777, %v779
    %v781 = vadd.f32 %v777, %v780
    %vm782 = vweird.f32 %v776
    %vm783 = vweird.f32 %v777
    %vm784 = vmor %vm782, %vm783
    %v785 = vsel %vm784, %v777, %v781
    %v786 = vand.u32 2147483647, %v776
    %vm787 = vcmp.eq.f32.partialorder %v786, 8.507059e+37
    %v788 = vand.u32 %v776, 2147483648
    %v789 = vor.u32 1.1754944e-38, %v788
    %v790 = vsel %vm787, %v789, %v785
    %v791 = vmul.f32 1.0, %v790
    %v792 = vtanh.pop %v772
    %794 = vrot.lane.b32.xlu0 %v747, 32
    %v795 = vpop.permute.xlu0 %794
    %v797 = vmul.f32 %v791, %v795
    %799 = vrot.lane.b32.xlu0 %v792, 64
    %v800 = vpop.permute.xlu0 %799
    %v802 = vmul.f32 %v791, %v800
    %804 = vrot.lane.b32.xlu0 %v802, 32
    %v805 = vpop.permute.xlu0 %804
    %v807 = vadd.f32 %v797, %v805
    %v808 = vtanh.pop %v807
    %810 = vrot.lane.b32.xlu0 %v808, 64
    %v811 = vpop.permute.xlu0 %810
    %v813 = vmul.f32 %v791, %v811
    %v815 = vrot.slane %v813, 1
    %v816 = vperm.slane %v813, 0
    %v817 = vperm.slane %v815, 0
    %818 = vrot.lane.b32.xlu0 %v816, 32
    %v819 = vpop.permute.xlu0 %818
    %820 = vrot.lane.b32.xlu0 %v817, 32
    %v821 = vpop.permute.xlu0 %820
    %vm824 = vcmask 253952
    %825 = vst.msk [vmem:[#allocation10] sm:$0x1] %vm824, %v819
    %826 = vst.msk [vmem:[#allocation10 + $0x8] sm:$0x1] %vm824, %v821
    %s827 = scalar_lea.vmem [#allocation3], 2
    %v828 = vld [vmem:[%s827] sm:$0x3]
    %829 = vrot.lane.b32.xlu0 %v813, 32
    %v830 = vpop.permute.xlu0 %829
    %v831 = vsel %vm75, %v830, 0
    %833 = vmatpush.msra.mxu0 0.0
    %834 = vmatpush.msra.mxu0 0.0
    %835 = vmatpush.msra.mxu0 0.0
    %836 = vmatpush.msra.mxu0 0.0
    %837 = vmatpush.msra.mxu0 0.0
    %838 = vmatpush.msra.mxu0 0.0
    %839 = vmatpush.msra.mxu0 0.0
    %840 = vmatpush.msra.mxu0 0.0
    %841 = vmatpush.msra.mxu0 0.0
    %842 = vmatpush.msra.mxu0 0.0
    %843 = vmatpush.msra.mxu0 0.0
    %844 = vmatpush.msra.mxu0 0.0
    %845 = vmatpush.msra.mxu0 %v743
    %846 = vmatpush.msra.mxu0 %v742
    %847 = vmatpush.msra.mxu0 %v741
    %848 = vmatpush.msra.mxu0 %v740
    %849 = vmatmul.f32.gmra.mxu0 %v831
    %v850 = vpop.f32.mrf.mxu0
    %v851 = vadd.f32 0.0, %v850
    %852 = vdwg.mxu0
    %v853 = vadd.f32 %v828, %v851
    %v854 = vxor.u32 %v853, 2147483648
    %v855 = vmul.f32 %v854, 1.442695
    %v856 = vpow.pop %v855
    %v857 = vadd.f32 %v856, 1.0
    %v858 = vrcp.pop %v857
    %v859 = vmul.f32 %v857, %v858
    %v860 = vsub.f32 1.0, %v859
    %v861 = vmul.f32 %v858, %v860
    %v862 = vadd.f32 %v858, %v861
    %vm863 = vweird.f32 %v857
    %vm864 = vweird.f32 %v858
    %vm865 = vmor %vm863, %vm864
    %v866 = vsel %vm865, %v858, %v862
    %v867 = vand.u32 2147483647, %v857
    %vm868 = vcmp.eq.f32.partialorder %v867, 8.507059e+37
    %v869 = vand.u32 %v857, 2147483648
    %v870 = vor.u32 1.1754944e-38, %v869
    %v871 = vsel %vm868, %v870, %v866
    %v872 = vmul.f32 1.0, %v871
    %v873 = vtanh.pop %v853
    %v874 = vmul.f32 %v872, %v807
    %876 = vrot.lane.b32.xlu0 %v873, 64
    %v877 = vpop.permute.xlu0 %876
    %v879 = vmul.f32 %v872, %v877
    %881 = vrot.lane.b32.xlu0 %v879, 32
    %v882 = vpop.permute.xlu0 %881
    %v884 = vadd.f32 %v874, %v882
    %v885 = vtanh.pop %v884
    %887 = vrot.lane.b32.xlu0 %v885, 64
    %v888 = vpop.permute.xlu0 %887
    %v890 = vmul.f32 %v872, %v888
    %v892 = vrot.slane %v890, 1
    %v893 = vperm.slane %v890, 0
    %v894 = vperm.slane %v892, 0
    %895 = vrot.lane.b32.xlu0 %v893, 32
    %v896 = vpop.permute.xlu0 %895
    %897 = vrot.lane.b32.xlu0 %v894, 32
    %v898 = vpop.permute.xlu0 %897
    %901 = vst.msk [vmem:[#allocation10 + $0x1] sm:$0x1] %vm824, %v896
    %902 = vst.msk [vmem:[#allocation10 + $0x9] sm:$0x1] %vm824, %v898
    %s903 = scalar_lea.vmem [#allocation3], 4
    %v904 = vld [vmem:[%s903] sm:$0x3]
    %905 = vrot.lane.b32.xlu0 %v890, 32
    %v906 = vpop.permute.xlu0 %905
    %v907 = vsel %vm75, %v906, 0
    %909 = vmatpush.msra.mxu0 0.0
    %910 = vmatpush.msra.mxu0 0.0
    %911 = vmatpush.msra.mxu0 0.0
    %912 = vmatpush.msra.mxu0 0.0
    %913 = vmatpush.msra.mxu0 0.0
    %914 = vmatpush.msra.mxu0 0.0
    %915 = vmatpush.msra.mxu0 0.0
    %916 = vmatpush.msra.mxu0 0.0
    %917 = vmatpush.msra.mxu0 0.0
    %918 = vmatpush.msra.mxu0 0.0
    %919 = vmatpush.msra.mxu0 0.0
    %920 = vmatpush.msra.mxu0 0.0
    %921 = vmatpush.msra.mxu0 %v743
    %922 = vmatpush.msra.mxu0 %v742
    %923 = vmatpush.msra.mxu0 %v741
    %924 = vmatpush.msra.mxu0 %v740
    %925 = vmatmul.f32.gmra.mxu0 %v907
    %v926 = vpop.f32.mrf.mxu0
    %v927 = vadd.f32 0.0, %v926
    %928 = vdwg.mxu0
    %v929 = vadd.f32 %v904, %v927
    %v930 = vxor.u32 %v929, 2147483648
    %v931 = vmul.f32 %v930, 1.442695
    %v932 = vpow.pop %v931
    %v933 = vadd.f32 %v932, 1.0
    %v934 = vrcp.pop %v933
    %v935 = vmul.f32 %v933, %v934
    %v936 = vsub.f32 1.0, %v935
    %v937 = vmul.f32 %v934, %v936
    %v938 = vadd.f32 %v934, %v937
    %vm939 = vweird.f32 %v933
    %vm940 = vweird.f32 %v934
    %vm941 = vmor %vm939, %vm940
    %v942 = vsel %vm941, %v934, %v938
    %v943 = vand.u32 2147483647, %v933
    %vm944 = vcmp.eq.f32.partialorder %v943, 8.507059e+37
    %v945 = vand.u32 %v933, 2147483648
    %v946 = vor.u32 1.1754944e-38, %v945
    %v947 = vsel %vm944, %v946, %v942
    %v948 = vmul.f32 1.0, %v947
    %v949 = vtanh.pop %v929
    %v950 = vmul.f32 %v948, %v884
    %952 = vrot.lane.b32.xlu0 %v949, 64
    %v953 = vpop.permute.xlu0 %952
    %v955 = vmul.f32 %v948, %v953
    %957 = vrot.lane.b32.xlu0 %v955, 32
    %v958 = vpop.permute.xlu0 %957
    %v960 = vadd.f32 %v950, %v958
    %v961 = vtanh.pop %v960
    %963 = vrot.lane.b32.xlu0 %v961, 64
    %v964 = vpop.permute.xlu0 %963
    %v966 = vmul.f32 %v948, %v964
    %v968 = vrot.slane %v966, 1
    %v969 = vperm.slane %v966, 0
    %v970 = vperm.slane %v968, 0
    %971 = vrot.lane.b32.xlu0 %v969, 32
    %v972 = vpop.permute.xlu0 %971
    %973 = vrot.lane.b32.xlu0 %v970, 32
    %v974 = vpop.permute.xlu0 %973
    %977 = vst.msk [vmem:[#allocation10 + $0x2] sm:$0x1] %vm824, %v972
    %978 = vst.msk [vmem:[#allocation10 + $0xa] sm:$0x1] %vm824, %v974
    %s979 = scalar_lea.vmem [#allocation3], 6
    %v980 = vld [vmem:[%s979] sm:$0x3]
    %981 = vrot.lane.b32.xlu0 %v966, 32
    %v982 = vpop.permute.xlu0 %981
    %v983 = vsel %vm75, %v982, 0
    %985 = vmatpush.msra.mxu0 0.0
    %986 = vmatpush.msra.mxu0 0.0
    %987 = vmatpush.msra.mxu0 0.0
    %988 = vmatpush.msra.mxu0 0.0
    %989 = vmatpush.msra.mxu0 0.0
    %990 = vmatpush.msra.mxu0 0.0
    %991 = vmatpush.msra.mxu0 0.0
    %992 = vmatpush.msra.mxu0 0.0
    %993 = vmatpush.msra.mxu0 0.0
    %994 = vmatpush.msra.mxu0 0.0
    %995 = vmatpush.msra.mxu0 0.0
    %996 = vmatpush.msra.mxu0 0.0
    %997 = vmatpush.msra.mxu0 %v743
    %998 = vmatpush.msra.mxu0 %v742
    %999 = vmatpush.msra.mxu0 %v741
    %1000 = vmatpush.msra.mxu0 %v740
    %1001 = vmatmul.f32.gmra.mxu0 %v983
    %v1002 = vpop.f32.mrf.mxu0
    %v1003 = vadd.f32 0.0, %v1002
    %1004 = vdwg.mxu0
    %v1005 = vadd.f32 %v980, %v1003
    %v1006 = vxor.u32 %v1005, 2147483648
    %v1007 = vmul.f32 %v1006, 1.442695
    %v1008 = vpow.pop %v1007
    %v1009 = vadd.f32 %v1008, 1.0
    %v1010 = vrcp.pop %v1009
    %v1011 = vmul.f32 %v1009, %v1010
    %v1012 = vsub.f32 1.0, %v1011
    %v1013 = vmul.f32 %v1010, %v1012
    %v1014 = vadd.f32 %v1010, %v1013
    %vm1015 = vweird.f32 %v1009
    %vm1016 = vweird.f32 %v1010
    %vm1017 = vmor %vm1015, %vm1016
    %v1018 = vsel %vm1017, %v1010, %v1014
    %v1019 = vand.u32 2147483647, %v1009
    %vm1020 = vcmp.eq.f32.partialorder %v1019, 8.507059e+37
    %v1021 = vand.u32 %v1009, 2147483648
    %v1022 = vor.u32 1.1754944e-38, %v1021
    %v1023 = vsel %vm1020, %v1022, %v1018
    %v1024 = vmul.f32 1.0, %v1023
    %v1025 = vtanh.pop %v1005
    %v1026 = vmul.f32 %v1024, %v960
    %1028 = vrot.lane.b32.xlu0 %v1025, 64
    %v1029 = vpop.permute.xlu0 %1028
    %v1031 = vmul.f32 %v1024, %v1029
    %1033 = vrot.lane.b32.xlu0 %v1031, 32
    %v1034 = vpop.permute.xlu0 %1033
    %v1036 = vadd.f32 %v1026, %v1034
    %v1037 = vtanh.pop %v1036
    %1039 = vrot.lane.b32.xlu0 %v1037, 64
    %v1040 = vpop.permute.xlu0 %1039
    %v1042 = vmul.f32 %v1024, %v1040
    %v1044 = vrot.slane %v1042, 1
    %v1045 = vperm.slane %v1042, 0
    %v1046 = vperm.slane %v1044, 0
    %1047 = vrot.lane.b32.xlu0 %v1045, 32
    %v1048 = vpop.permute.xlu0 %1047
    %1049 = vrot.lane.b32.xlu0 %v1046, 32
    %v1050 = vpop.permute.xlu0 %1049
    %1053 = vst.msk [vmem:[#allocation10 + $0x3] sm:$0x1] %vm824, %v1048
    %1054 = vst.msk [vmem:[#allocation10 + $0xb] sm:$0x1] %vm824, %v1050
    %s1055 = scalar_lea.vmem [#allocation3], 8
    %v1056 = vld [vmem:[%s1055] sm:$0x3]
    %1057 = vrot.lane.b32.xlu0 %v1042, 32
    %v1058 = vpop.permute.xlu0 %1057
    %v1059 = vsel %vm75, %v1058, 0
    %1061 = vmatpush.msra.mxu0 0.0
    %1062 = vmatpush.msra.mxu0 0.0
    %1063 = vmatpush.msra.mxu0 0.0
    %1064 = vmatpush.msra.mxu0 0.0
    %1065 = vmatpush.msra.mxu0 0.0
    %1066 = vmatpush.msra.mxu0 0.0
    %1067 = vmatpush.msra.mxu0 0.0
    %1068 = vmatpush.msra.mxu0 0.0
    %1069 = vmatpush.msra.mxu0 0.0
    %1070 = vmatpush.msra.mxu0 0.0
    %1071 = vmatpush.msra.mxu0 0.0
    %1072 = vmatpush.msra.mxu0 0.0
    %1073 = vmatpush.msra.mxu0 %v743
    %1074 = vmatpush.msra.mxu0 %v742
    %1075 = vmatpush.msra.mxu0 %v741
    %1076 = vmatpush.msra.mxu0 %v740
    %1077 = vmatmul.f32.gmra.mxu0 %v1059
    %v1078 = vpop.f32.mrf.mxu0
    %v1079 = vadd.f32 0.0, %v1078
    %1080 = vdwg.mxu0
    %v1081 = vadd.f32 %v1056, %v1079
    %v1082 = vxor.u32 %v1081, 2147483648
    %v1083 = vmul.f32 %v1082, 1.442695
    %v1084 = vpow.pop %v1083
    %v1085 = vadd.f32 %v1084, 1.0
    %v1086 = vrcp.pop %v1085
    %v1087 = vmul.f32 %v1085, %v1086
    %v1088 = vsub.f32 1.0, %v1087
    %v1089 = vmul.f32 %v1086, %v1088
    %v1090 = vadd.f32 %v1086, %v1089
    %vm1091 = vweird.f32 %v1085
    %vm1092 = vweird.f32 %v1086
    %vm1093 = vmor %vm1091, %vm1092
    %v1094 = vsel %vm1093, %v1086, %v1090
    %v1095 = vand.u32 2147483647, %v1085
    %vm1096 = vcmp.eq.f32.partialorder %v1095, 8.507059e+37
    %v1097 = vand.u32 %v1085, 2147483648
    %v1098 = vor.u32 1.1754944e-38, %v1097
    %v1099 = vsel %vm1096, %v1098, %v1094
    %v1100 = vmul.f32 1.0, %v1099
    %v1101 = vtanh.pop %v1081
    %v1102 = vmul.f32 %v1100, %v1036
    %1104 = vrot.lane.b32.xlu0 %v1101, 64
    %v1105 = vpop.permute.xlu0 %1104
    %v1107 = vmul.f32 %v1100, %v1105
    %1109 = vrot.lane.b32.xlu0 %v1107, 32
    %v1110 = vpop.permute.xlu0 %1109
    %v1112 = vadd.f32 %v1102, %v1110
    %v1113 = vtanh.pop %v1112
    %1115 = vrot.lane.b32.xlu0 %v1113, 64
    %v1116 = vpop.permute.xlu0 %1115
    %v1118 = vmul.f32 %v1100, %v1116
    %v1120 = vrot.slane %v1118, 1
    %v1121 = vperm.slane %v1118, 0
    %v1122 = vperm.slane %v1120, 0
    %1123 = vrot.lane.b32.xlu0 %v1121, 32
    %v1124 = vpop.permute.xlu0 %1123
    %1125 = vrot.lane.b32.xlu0 %v1122, 32
    %v1126 = vpop.permute.xlu0 %1125
    %1129 = vst.msk [vmem:[#allocation10 + $0x4] sm:$0x1] %vm824, %v1124
    %1130 = vst.msk [vmem:[#allocation10 + $0xc] sm:$0x1] %vm824, %v1126
    %s1131 = scalar_lea.vmem [#allocation3], 10
    %v1132 = vld [vmem:[%s1131] sm:$0x3]
    %1133 = vrot.lane.b32.xlu0 %v1118, 32
    %v1134 = vpop.permute.xlu0 %1133
    %v1135 = vsel %vm75, %v1134, 0
    %1137 = vmatpush.msra.mxu0 0.0
    %1138 = vmatpush.msra.mxu0 0.0
    %1139 = vmatpush.msra.mxu0 0.0
    %1140 = vmatpush.msra.mxu0 0.0
    %1141 = vmatpush.msra.mxu0 0.0
    %1142 = vmatpush.msra.mxu0 0.0
    %1143 = vmatpush.msra.mxu0 0.0
    %1144 = vmatpush.msra.mxu0 0.0
    %1145 = vmatpush.msra.mxu0 0.0
    %1146 = vmatpush.msra.mxu0 0.0
    %1147 = vmatpush.msra.mxu0 0.0
    %1148 = vmatpush.msra.mxu0 0.0
    %1149 = vmatpush.msra.mxu0 %v743
    %1150 = vmatpush.msra.mxu0 %v742
    %1151 = vmatpush.msra.mxu0 %v741
    %1152 = vmatpush.msra.mxu0 %v740
    %1153 = vmatmul.f32.gmra.mxu0 %v1135
    %v1154 = vpop.f32.mrf.mxu0
    %v1155 = vadd.f32 0.0, %v1154
    %1156 = vdwg.mxu0
    %v1157 = vadd.f32 %v1132, %v1155
    %v1158 = vxor.u32 %v1157, 2147483648
    %v1159 = vmul.f32 %v1158, 1.442695
    %v1160 = vpow.pop %v1159
    %v1161 = vadd.f32 %v1160, 1.0
    %v1162 = vrcp.pop %v1161
    %v1163 = vmul.f32 %v1161, %v1162
    %v1164 = vsub.f32 1.0, %v1163
    %v1165 = vmul.f32 %v1162, %v1164
    %v1166 = vadd.f32 %v1162, %v1165
    %vm1167 = vweird.f32 %v1161
    %vm1168 = vweird.f32 %v1162
    %vm1169 = vmor %vm1167, %vm1168
    %v1170 = vsel %vm1169, %v1162, %v1166
    %v1171 = vand.u32 2147483647, %v1161
    %vm1172 = vcmp.eq.f32.partialorder %v1171, 8.507059e+37
    %v1173 = vand.u32 %v1161, 2147483648
    %v1174 = vor.u32 1.1754944e-38, %v1173
    %v1175 = vsel %vm1172, %v1174, %v1170
    %v1176 = vmul.f32 1.0, %v1175
    %v1177 = vtanh.pop %v1157
    %v1178 = vmul.f32 %v1176, %v1112
    %1180 = vrot.lane.b32.xlu0 %v1177, 64
    %v1181 = vpop.permute.xlu0 %1180
    %v1183 = vmul.f32 %v1176, %v1181
    %1185 = vrot.lane.b32.xlu0 %v1183, 32
    %v1186 = vpop.permute.xlu0 %1185
    %v1188 = vadd.f32 %v1178, %v1186
    %v1189 = vtanh.pop %v1188
    %1191 = vrot.lane.b32.xlu0 %v1189, 64
    %v1192 = vpop.permute.xlu0 %1191
    %v1194 = vmul.f32 %v1176, %v1192
    %v1196 = vrot.slane %v1194, 1
    %v1197 = vperm.slane %v1194, 0
    %v1198 = vperm.slane %v1196, 0
    %1199 = vrot.lane.b32.xlu0 %v1197, 32
    %v1200 = vpop.permute.xlu0 %1199
    %1201 = vrot.lane.b32.xlu0 %v1198, 32
    %v1202 = vpop.permute.xlu0 %1201
    %1205 = vst.msk [vmem:[#allocation10 + $0x5] sm:$0x1] %vm824, %v1200
    %1206 = vst.msk [vmem:[#allocation10 + $0xd] sm:$0x1] %vm824, %v1202
    %s1207 = scalar_lea.vmem [#allocation3], 12
    %v1208 = vld [vmem:[%s1207] sm:$0x3]
    %1209 = vrot.lane.b32.xlu0 %v1194, 32
    %v1210 = vpop.permute.xlu0 %1209
    %v1211 = vsel %vm75, %v1210, 0
    %1213 = vmatpush.msra.mxu0 0.0
    %1214 = vmatpush.msra.mxu0 0.0
    %1215 = vmatpush.msra.mxu0 0.0
    %1216 = vmatpush.msra.mxu0 0.0
    %1217 = vmatpush.msra.mxu0 0.0
    %1218 = vmatpush.msra.mxu0 0.0
    %1219 = vmatpush.msra.mxu0 0.0
    %1220 = vmatpush.msra.mxu0 0.0
    %1221 = vmatpush.msra.mxu0 0.0
    %1222 = vmatpush.msra.mxu0 0.0
    %1223 = vmatpush.msra.mxu0 0.0
    %1224 = vmatpush.msra.mxu0 0.0
    %1225 = vmatpush.msra.mxu0 %v743
    %1226 = vmatpush.msra.mxu0 %v742
    %1227 = vmatpush.msra.mxu0 %v741
    %1228 = vmatpush.msra.mxu0 %v740
    %1229 = vmatmul.f32.gmra.mxu0 %v1211
    %v1230 = vpop.f32.mrf.mxu0
    %v1231 = vadd.f32 0.0, %v1230
    %1232 = vdwg.mxu0
    %v1233 = vadd.f32 %v1208, %v1231
    %v1234 = vxor.u32 %v1233, 2147483648
    %v1235 = vmul.f32 %v1234, 1.442695
    %v1236 = vpow.pop %v1235
    %v1237 = vadd.f32 %v1236, 1.0
    %v1238 = vrcp.pop %v1237
    %v1239 = vmul.f32 %v1237, %v1238
    %v1240 = vsub.f32 1.0, %v1239
    %v1241 = vmul.f32 %v1238, %v1240
    %v1242 = vadd.f32 %v1238, %v1241
    %vm1243 = vweird.f32 %v1237
    %vm1244 = vweird.f32 %v1238
    %vm1245 = vmor %vm1243, %vm1244
    %v1246 = vsel %vm1245, %v1238, %v1242
    %v1247 = vand.u32 2147483647, %v1237
    %vm1248 = vcmp.eq.f32.partialorder %v1247, 8.507059e+37
    %v1249 = vand.u32 %v1237, 2147483648
    %v1250 = vor.u32 1.1754944e-38, %v1249
    %v1251 = vsel %vm1248, %v1250, %v1246
    %v1252 = vmul.f32 1.0, %v1251
    %v1253 = vtanh.pop %v1233
    %v1254 = vmul.f32 %v1252, %v1188
    %1256 = vrot.lane.b32.xlu0 %v1253, 64
    %v1257 = vpop.permute.xlu0 %1256
    %v1259 = vmul.f32 %v1252, %v1257
    %1261 = vrot.lane.b32.xlu0 %v1259, 32
    %v1262 = vpop.permute.xlu0 %1261
    %v1264 = vadd.f32 %v1254, %v1262
    %v1265 = vtanh.pop %v1264
    %1267 = vrot.lane.b32.xlu0 %v1265, 64
    %v1268 = vpop.permute.xlu0 %1267
    %v1270 = vmul.f32 %v1252, %v1268
    %v1272 = vrot.slane %v1270, 1
    %v1273 = vperm.slane %v1270, 0
    %v1274 = vperm.slane %v1272, 0
    %1275 = vrot.lane.b32.xlu0 %v1273, 32
    %v1276 = vpop.permute.xlu0 %1275
    %1277 = vrot.lane.b32.xlu0 %v1274, 32
    %v1278 = vpop.permute.xlu0 %1277
    %1281 = vst.msk [vmem:[#allocation10 + $0x6] sm:$0x1] %vm824, %v1276
    %1282 = vst.msk [vmem:[#allocation10 + $0xe] sm:$0x1] %vm824, %v1278
    %s1283 = scalar_lea.vmem [#allocation3], 14
    %v1284 = vld [vmem:[%s1283] sm:$0x3]
    %1285 = vrot.lane.b32.xlu0 %v1270, 32
    %v1286 = vpop.permute.xlu0 %1285
    %v1287 = vsel %vm75, %v1286, 0
    %1289 = vmatpush.msra.mxu0 0.0
    %1290 = vmatpush.msra.mxu0 0.0
    %1291 = vmatpush.msra.mxu0 0.0
    %1292 = vmatpush.msra.mxu0 0.0
    %1293 = vmatpush.msra.mxu0 0.0
    %1294 = vmatpush.msra.mxu0 0.0
    %1295 = vmatpush.msra.mxu0 0.0
    %1296 = vmatpush.msra.mxu0 0.0
    %1297 = vmatpush.msra.mxu0 0.0
    %1298 = vmatpush.msra.mxu0 0.0
    %1299 = vmatpush.msra.mxu0 0.0
    %1300 = vmatpush.msra.mxu0 0.0
    %1301 = vmatpush.msra.mxu0 %v743
    %1302 = vmatpush.msra.mxu0 %v742
    %1303 = vmatpush.msra.mxu0 %v741
    %1304 = vmatpush.msra.mxu0 %v740
    %1305 = vmatmul.f32.gmra.mxu0 %v1287
    %v1306 = vpop.f32.mrf.mxu0
    %v1307 = vadd.f32 0.0, %v1306
    %1308 = vdwg.mxu0
    %v1309 = vadd.f32 %v1284, %v1307
    %v1310 = vxor.u32 %v1309, 2147483648
    %v1311 = vmul.f32 %v1310, 1.442695
    %v1312 = vpow.pop %v1311
    %v1313 = vadd.f32 %v1312, 1.0
    %v1314 = vrcp.pop %v1313
    %v1315 = vmul.f32 %v1313, %v1314
    %v1316 = vsub.f32 1.0, %v1315
    %v1317 = vmul.f32 %v1314, %v1316
    %v1318 = vadd.f32 %v1314, %v1317
    %vm1319 = vweird.f32 %v1313
    %vm1320 = vweird.f32 %v1314
    %vm1321 = vmor %vm1319, %vm1320
    %v1322 = vsel %vm1321, %v1314, %v1318
    %v1323 = vand.u32 2147483647, %v1313
    %vm1324 = vcmp.eq.f32.partialorder %v1323, 8.507059e+37
    %v1325 = vand.u32 %v1313, 2147483648
    %v1326 = vor.u32 1.1754944e-38, %v1325
    %v1327 = vsel %vm1324, %v1326, %v1322
    %v1328 = vmul.f32 1.0, %v1327
    %v1329 = vtanh.pop %v1309
    %v1330 = vmul.f32 %v1328, %v1264
    %1332 = vrot.lane.b32.xlu0 %v1329, 64
    %v1333 = vpop.permute.xlu0 %1332
    %v1335 = vmul.f32 %v1328, %v1333
    %1337 = vrot.lane.b32.xlu0 %v1335, 32
    %v1338 = vpop.permute.xlu0 %1337
    %v1340 = vadd.f32 %v1330, %v1338
    %v1341 = vtanh.pop %v1340
    %1343 = vrot.lane.b32.xlu0 %v1341, 64
    %v1344 = vpop.permute.xlu0 %1343
    %v1346 = vmul.f32 %v1328, %v1344
    %v1348 = vrot.slane %v1346, 1
    %v1349 = vperm.slane %v1346, 0
    %v1350 = vperm.slane %v1348, 0
    %1351 = vrot.lane.b32.xlu0 %v1349, 32
    %v1352 = vpop.permute.xlu0 %1351
    %1353 = vrot.lane.b32.xlu0 %v1350, 32
    %v1354 = vpop.permute.xlu0 %1353
    %1357 = vst.msk [vmem:[#allocation10 + $0x7] sm:$0x1] %vm824, %v1352
    %1358 = vst.msk [vmem:[#allocation10 + $0xf] sm:$0x1] %vm824, %v1354
    %1359 = vrot.lane.b32.xlu0 %v1346, 32
    %v1360 = vpop.permute.xlu0 %1359
    %s1362 = scalar_lea.vmem [#allocation12], 2
    %1363 = vst.msk [vmem:[%s1362] sm:$0x3] %vm145, %v1360
    %1365 = vrot.lane.b32.xlu0 %v1340, 96
    %v1366 = vpop.permute.xlu0 %1365
    %s1368 = scalar_lea.vmem [#allocation13], 2
    %1369 = vst.msk [vmem:[%s1368] sm:$0x3] %vm145, %v1366
    %v1370 = vld [vmem:[#allocation10] sm:$0xff]
    %v1371 = vld [vmem:[#allocation10 + $0x8] sm:$0xff]
    %v1372 = vld [vmem:[%s6] sm:$0xff]
    %v1373 = vld [vmem:[%s6 + $0x8] sm:$0xff]
    %v1374 = vld [vmem:[%s6 + $0x10] sm:$0xff]
    %v1375 = vld [vmem:[%s6 + $0x18] sm:$0xff]
    %v1376 = vld [vmem:[%s7] sm:$0x1]
    %v1378 = vperm.slane %v1376, 0
    %v1381 = vsel %vm75, %v1370, 0
    %v1384 = vsel %vm75, %v1371, 0
    %1386 = vmatpush.msra.mxu0 0.0
    %1387 = vmatpush.msra.mxu0 0.0
    %1388 = vmatpush.msra.mxu0 0.0
    %1389 = vmatpush.msra.mxu0 0.0
    %1390 = vmatpush.msra.mxu0 0.0
    %1391 = vmatpush.msra.mxu0 0.0
    %1392 = vmatpush.msra.mxu0 0.0
    %1393 = vmatpush.msra.mxu0 0.0
    %1394 = vmatpush.msra.mxu0 0.0
    %1395 = vmatpush.msra.mxu0 0.0
    %1396 = vmatpush.msra.mxu0 0.0
    %1397 = vmatpush.msra.mxu0 0.0
    %1398 = vmatpush.msra.mxu0 %v1375
    %1399 = vmatpush.msra.mxu0 %v1374
    %1400 = vmatpush.msra.mxu0 %v1373
    %1401 = vmatpush.msra.mxu0 %v1372
    %1402 = vmatmul.f32.gmra.mxu0 %v1381
    %v1403 = vpop.f32.mrf.mxu0
    %v1404 = vadd.f32 %v1378, %v1403
    %1405 = vmatmul.f32.gmra.mxu0 %v1384
    %v1406 = vpop.f32.mrf.mxu0
    %v1407 = vadd.f32 %v1378, %v1406
    %1408 = vdwg.mxu0
    %vm1409 = vcmask 64512
    %1410 = vst.msk [vmem:[#allocation9] sm:$0xff] %vm1409, %v1404
    %1411 = vst.msk [vmem:[#allocation9 + $0x8] sm:$0xff] %vm1409, %v1407
    // Predicated region
    $region42: #{tpu_custom_call.1} parent=1 // pred_check
      _
    $region43: #{tpu_custom_call.1} parent=1 // pred_check_branch
      %1413 = sbr.rel (0) target = $region45
    $region44: #{tpu_custom_call.1} parent=1 // pred_region
      %1415 = vsyncadd [#allocation6], 0
      %s1416 = sshll.u32 [#allocation9], 4
      %s1417 = int_to_ptr.vmem [resolvable:$true] %s1416
      %s1418 = sshll.u32 %s8, 4
      %s1419 = int_to_ptr.hbm [resolvable:$true] %s1418
      %1424 = dma.vmem_to_hbm [thread:$0]  %s1417, 256, %s1419, [#allocation6], 128, 128, 8
    $region45: #{tpu_custom_call.1} parent=1 // pred_fallthru
      _
    // Predicated region
    $region46: #{tpu_custom_call.1} parent=1 // pred_check
      _
    $region47: #{tpu_custom_call.1} parent=1 // pred_check_branch
      %1426 = sbr.rel (0) target = $region49
    $region48: #{tpu_custom_call.1} parent=1 // pred_region
      %1428 = vsyncadd [#allocation11], 0
      %s1429 = sshll.u32 [#allocation10], 4
      %s1430 = int_to_ptr.vmem [resolvable:$true] %s1429
      %s1431 = sshll.u32 %s9, 4
      %s1432 = int_to_ptr.hbm [resolvable:$true] %s1431
      %1437 = dma.vmem_to_hbm [thread:$0]  %s1430, 256, %s1432, [#allocation11], 128, 128, 8
    $region49: #{tpu_custom_call.1} parent=1 // pred_fallthru
      _
    // Predicated region
    $region50: #{tpu_custom_call.1} parent=1 // pred_check
      _
    $region51: #{tpu_custom_call.1} parent=1 // pred_check_branch
      %1439 = sbr.rel (0) target = $region53
    $region52: #{tpu_custom_call.1} parent=1 // pred_region
      %1441 = vsyncadd [#allocation11], 0
      %s1442 = sshll.u32 [#allocation12], 4
      %s1443 = int_to_ptr.vmem [resolvable:$true] %s1442
      %s1444 = sshll.u32 %s10, 4
      %s1445 = int_to_ptr.hbm [resolvable:$true] %s1444
      %1450 = dma.vmem_to_hbm [thread:$0]  %s1443, 64, %s1445, [#allocation11], 32, 32, 2
    $region53: #{tpu_custom_call.1} parent=1 // pred_fallthru
      _
    // Predicated region
    $region54: #{tpu_custom_call.1} parent=1 // pred_check
      _
    $region55: #{tpu_custom_call.1} parent=1 // pred_check_branch
      %1452 = sbr.rel (0) target = $region57
    $region56: #{tpu_custom_call.1} parent=1 // pred_region
      %1454 = vsyncadd [#allocation14], 0
      %s1455 = sshll.u32 [#allocation13], 4
      %s1456 = int_to_ptr.vmem [resolvable:$true] %s1455
      %s1457 = sshll.u32 %s11, 4
      %s1458 = int_to_ptr.hbm [resolvable:$true] %s1457
      %1463 = dma.vmem_to_hbm [thread:$0]  %s1456, 64, %s1458, [#allocation14], 32, 32, 2
    $region57: #{tpu_custom_call.1} parent=1 // pred_fallthru
      _
    // Predicated region
    $region58: #{tpu_custom_call.1} parent=1 // pred_check
      _
    $region59: #{tpu_custom_call.1} parent=1 // pred_check_branch
      %1465 = sbr.rel (0) target = $region61
    $region60: #{tpu_custom_call.1} parent=1 // pred_region
      %1467 = dma.done [#allocation6], 256
    $region61: #{tpu_custom_call.1} parent=1 // pred_fallthru
      _
    // Predicated region
    $region62: #{tpu_custom_call.1} parent=1 // pred_check
      _
    $region63: #{tpu_custom_call.1} parent=1 // pred_check_branch
      %1469 = sbr.rel (0) target = $region65
    $region64: #{tpu_custom_call.1} parent=1 // pred_region
      %1471 = dma.done [#allocation11], 256
    $region65: #{tpu_custom_call.1} parent=1 // pred_fallthru
      _
    // Predicated region
    $region66: #{tpu_custom_call.1} parent=1 // pred_check
      _
    $region67: #{tpu_custom_call.1} parent=1 // pred_check_branch
      %1473 = sbr.rel (0) target = $region69
    $region68: #{tpu_custom_call.1} parent=1 // pred_region
      %1475 = dma.done [#allocation11], 64
    $region69: #{tpu_custom_call.1} parent=1 // pred_fallthru
      _
    // Predicated region
    $region70: #{tpu_custom_call.1} parent=1 // pred_check
      _
    $region71: #{tpu_custom_call.1} parent=1 // pred_check_branch
      %1477 = sbr.rel (0) target = $region73
    $region72: #{tpu_custom_call.1} parent=1 // pred_region
      %1479 = dma.done [#allocation14], 64
    $region73: #{tpu_custom_call.1} parent=1 // pred_fallthru
      _
    %1480 = vsyncpa [#allocation5], 1
    %1481 = vsyncpa [#allocation8], 1
    %1482 = vsyncpa [#allocation6], 1
    %1483 = vsyncpa [#allocation11], 1
    %1484 = vsyncpa [#allocation14], 1

</llo_original>
